<compile_context>
chip_gen: v5e
topology: v5e:2x2
jax: 0.10.0
libtpu: 0.0.40
codegen_flags: <defaults>
</compile_context>

<pallas_src>
import functools
import math

import jax
import jax.numpy as jnp
import numpy as np
from jax.experimental import pallas as pl
from jax.experimental.pallas import tpu as pltpu


def attention_kernel(x_ref, wqkv_ref, bqkv_ref, wo_ref, bo_ref, pos_ref, o_ref,
                     ctx_ref, *, num_heads, head_size, seq_len):
    R, P = x_ref.shape                                    # R = bb * S rows
    H, D, S = num_heads, head_size, seq_len
    Bb = R // S

    # ---- fused Q/K/V projection: one (R,P) x (P,3P) MXU push ----------------
    qkv = jnp.dot(x_ref[...], wqkv_ref[...],
                  preferred_element_type=jnp.float32) + bqkv_ref[0]   # (R, 3P)

    pos = pos_ref[...]                                    # (H, S, S), pre-scaled

    # Hoist the per-head slicing/relayout out of the head loop:
    # 3 relayout copies total instead of 3 per head.
    q_all = qkv[:, 0 * P:1 * P].reshape(Bb, S, H, D)
    k_all = qkv[:, 1 * P:2 * P].reshape(Bb, S, H, D)
    v_all = qkv[:, 2 * P:3 * P].reshape(Bb, S, H, D)

    # Per-head attention. Heads are statically unrolled so the scheduler can
    # interleave MXU (scores/ctx), XLU (max/sum) and EUP (exp) work of
    # independent heads. The 1/sqrt(D) scale is already folded into q and pos.
    for h in range(H):
        qh = q_all[:, :, h, :]                            # (Bb, S, D)
        kh = k_all[:, :, h, :]
        vh = v_all[:, :, h, :]

        scores = jnp.einsum('bsd,btd->bst', qh, kh,
                            preferred_element_type=jnp.float32)       # (Bb, S, S)
        scores = scores + pos[h]                          # additive positional bias

        scores = scores - jnp.max(scores, axis=-1, keepdims=True)
        p = jnp.exp(scores)
        probs = p * pl.reciprocal(jnp.sum(p, axis=-1, keepdims=True),
                                  approx=False)           # exact softmax
        # attn_dropout: identity (eval mode / rate 0)

        ctx = jnp.einsum('bst,btd->bsd', probs, vh,
                         preferred_element_type=jnp.float32)          # (Bb, S, D)
        # Write this head's context into its lane slice of the shared context
        # buffer (heads are lane-contiguous in the (R, P) layout).
        ctx_ref[:, h * D:(h + 1) * D] = ctx.reshape(R, D)

    # ---- single output projection over all heads (K = P, not 4 x K = D) -----
    out = jnp.dot(ctx_ref[...], wo_ref[...],
                  preferred_element_type=jnp.float32) + bo_ref[0]
    # proj_dropout: identity (eval mode / rate 0)
    o_ref[...] = out.astype(o_ref.dtype)


def fuse_params(params, num_heads):
    """Fuse Q/K/V weights/biases and fold 1/sqrt(D) into q and the pos bias.

    Done once, outside the kernel (and outside the per-call hot path)."""
    wq, bq, wk, bk, wv, bv, wo, bo, pos = params
    P = wq.shape[0]
    D = P // num_heads
    s = jnp.float32(1.0 / math.sqrt(D))
    wqkv = jnp.concatenate([wq * s, wk, wv], axis=1)      # (P, 3P)
    bqkv = jnp.concatenate([bq * s, bk, bv], axis=1)      # (1, 3P)
    pos_scaled = (pos * s)[0]                             # (H, S, S)
    return wqkv, bqkv, wo, bo, pos_scaled


def _batch_block(B, S):
    """Default: whole batch in one grid step (one TensorCore).

    Split across the two v7x TensorCores only when each core's block is large
    enough (hundreds of rows) to amortize the ~0.35 us per-grid-step overhead
    and the duplicated weight/pos DMA, and only when B splits evenly (avoids
    partial blocks with unspecified padding rows)."""
    try:
        kind = jax.devices()[0].device_kind.lower()
    except Exception:
        kind = ""
    if "v7" in kind and B % 2 == 0 and (B // 2) * S >= 512:
        return B // 2
    return B


def attention_forward(x, params, num_heads, batch_block=None):
    """x: (B, S, P) float32; params: raw (wq, bq, wk, bk, wv, bv, wo, bo, pos)."""
    B, S, P = x.shape
    assert P % num_heads == 0
    head_size = P // num_heads
    wqkv, bqkv, wo, bo, pos = fuse_params(params, num_heads)

    bb = batch_block if batch_block is not None else _batch_block(B, S)
    if B % bb != 0:            # never create partial blocks (garbage-row concern)
        bb = B
    nblk = B // bb
    rows = bb * S

    x2 = x.reshape(B * S, P)   # lane-dense (rows, P) slab; kernel needs no reshape

    kernel = functools.partial(attention_kernel, num_heads=num_heads,
                               head_size=head_size, seq_len=S)

    out2 = pl.pallas_call(
        kernel,
        out_shape=jax.ShapeDtypeStruct((B * S, P), x.dtype),
        grid=(nblk,),
        in_specs=[
            pl.BlockSpec((rows, P), lambda b: (b, 0)),            # hidden_states
            pl.BlockSpec((P, 3 * P), lambda b: (0, 0)),           # fused QKV weight
            pl.BlockSpec((1, 3 * P), lambda b: (0, 0)),           # fused QKV bias
            pl.BlockSpec((P, P), lambda b: (0, 0)),               # out weight
            pl.BlockSpec((1, P), lambda b: (0, 0)),               # out bias
            pl.BlockSpec((num_heads, S, S), lambda b: (0, 0, 0)), # pre-scaled pos
        ],
        out_specs=pl.BlockSpec((rows, P), lambda b: (b, 0)),
        scratch_shapes=[pltpu.VMEM((rows, P), jnp.float32)],      # context buffer
        compiler_params=pltpu.CompilerParams(dimension_semantics=("parallel",)),
    )(x2, wqkv, bqkv, wo, bo, pos)

    # TODO(synk): if this attention is called per-layer in a loop, amortize the
    # per-pallas_call launch and weight DMA (fuse layers into one call or keep
    # weights VMEM-resident across calls) -- that is the dominant cost at this size.
    return out2.reshape(B, S, P)


def attention_ref(x, params, num_heads):
    """Pure-JAX reference mirroring the torch forward exactly (bias then scale)."""
    wq, bq, wk, bk, wv, bv, wo, bo, pos = params
    B, S, P = x.shape
    D = P // num_heads

    def split_heads(t):
        return t.reshape(B, S, num_heads, D).transpose(0, 2, 1, 3)   # (B,H,S,D)

    q = split_heads(x @ wq + bq[0])
    k = split_heads(x @ wk + bk[0])
    v = split_heads(x @ wv + bv[0])

    scores = jnp.einsum('bhsd,bhtd->bhst', q, k)
    scores = scores + pos
    scores = scores / math.sqrt(D)
    probs = jax.nn.softmax(scores, axis=-1)
    ctx = jnp.einsum('bhst,bhtd->bhsd', probs, v)
    ctx = ctx.transpose(0, 2, 1, 3).reshape(B, S, P)
    return ctx @ wo + bo[0]


if __name__ == "__main__":
    # Small config consistent with the module:
    #   config.n_patches = 32, config.transformer.num_heads = 4 -> head_size = 8
    #   config.n_classes = 8  (sequence length, forced by the pos-bias broadcast)
    B, S, P, H = 2, 8, 32, 4

    key = jax.random.PRNGKey(0)
    ks = jax.random.split(key, 10)
    w_scale = 0.05

    x = jax.random.normal(ks[0], (B, S, P), jnp.float32)
    wq = jax.random.normal(ks[1], (P, P), jnp.float32) * w_scale
    wk = jax.random.normal(ks[2], (P, P), jnp.float32) * w_scale
    wv = jax.random.normal(ks[3], (P, P), jnp.float32) * w_scale
    wo = jax.random.normal(ks[4], (P, P), jnp.float32) * w_scale
    bq = jax.random.normal(ks[5], (1, P), jnp.float32) * w_scale
    bk = jax.random.normal(ks[6], (1, P), jnp.float32) * w_scale
    bv = jax.random.normal(ks[7], (1, P), jnp.float32) * w_scale
    bo = jax.random.normal(ks[8], (1, P), jnp.float32) * w_scale
    pos = jax.random.normal(ks[9], (1, H, S, S), jnp.float32)   # torch.randn init

    params = (wq, bq, wk, bk, wv, bv, wo, bo, pos)

    out = attention_forward(x, params, H)
    out = jax.block_until_ready(out)

    ref = attention_ref(x, params, H)
    np.testing.assert_allclose(np.asarray(out), np.asarray(ref),
                               rtol=2e-3, atol=2e-3)

    print("KERNEL_OK")
</pallas_src>

<mosaic_0001>
module attributes {stable_mosaic.version = 11 : i64} {
  func.func @attention_kernel(%arg0: i32, %arg1: memref<16x32xf32, #tpu.memory_space<vmem>>, %arg2: memref<32x96xf32, #tpu.memory_space<vmem>>, %arg3: memref<1x96xf32, #tpu.memory_space<vmem>>, %arg4: memref<32x32xf32, #tpu.memory_space<vmem>>, %arg5: memref<1x32xf32, #tpu.memory_space<vmem>>, %arg6: memref<4x8x8xf32, #tpu.memory_space<vmem>>, %arg7: memref<16x32xf32, #tpu.memory_space<vmem>>, %arg8: memref<16x32xf32, #tpu.memory_space<vmem>>) attributes {dimension_semantics = [#tpu.dimension_semantics<parallel>], iteration_bounds = array<i64: 1>, scalar_prefetch = 0 : i64, scratch_operands = 1 : i64, tpu.core_type = #tpu.core_type<tc>, window_params = [{transform_indices = @transform_0, window_bounds = array<i64: 16, 32>}, {pipeline_mode = #tpu.pipeline_mode<synchronous>, transform_indices = @transform_1, window_bounds = array<i64: 32, 96>}, {pipeline_mode = #tpu.pipeline_mode<synchronous>, transform_indices = @transform_2, window_bounds = array<i64: 1, 96>}, {pipeline_mode = #tpu.pipeline_mode<synchronous>, transform_indices = @transform_3, window_bounds = array<i64: 32, 32>}, {pipeline_mode = #tpu.pipeline_mode<synchronous>, transform_indices = @transform_4, window_bounds = array<i64: 1, 32>}, {pipeline_mode = #tpu.pipeline_mode<synchronous>, transform_indices = @transform_5, window_bounds = array<i64: 4, 8, 8>}, {transform_indices = @transform_6, window_bounds = array<i64: 16, 32>}]} {
    %c0 = arith.constant 0 : index
    %c0_0 = arith.constant 0 : index
    %0 = vector.load %arg1[%c0, %c0_0] : memref<16x32xf32, #tpu.memory_space<vmem>>, vector<16x32xf32>
    %c0_1 = arith.constant 0 : index
    %c0_2 = arith.constant 0 : index
    %1 = vector.load %arg2[%c0_1, %c0_2] : memref<32x96xf32, #tpu.memory_space<vmem>>, vector<32x96xf32>
    %cst = arith.constant dense<0.000000e+00> : vector<16x96xf32>
    %2 = tpu.matmul %0, %1, %cst {dimension_numbers = #tpu.dot_dimension_numbers<[1], [0], [0], [1], [0, 0, 1, 1], [], []>} : vector<16x32xf32>, vector<32x96xf32>, vector<16x96xf32> -> vector<16x96xf32>
    %c0_3 = arith.constant 0 : index
    %c0_4 = arith.constant 0 : index
    %3 = vector.load %arg3[%c0_3, %c0_4] : memref<1x96xf32, #tpu.memory_space<vmem>>, vector<1x96xf32>
    %4 = vector.shape_cast %3 : vector<1x96xf32> to vector<96xf32>
    %5 = vector.shape_cast %4 : vector<96xf32> to vector<1x96xf32>
    %6 = vector.broadcast %5 : vector<1x96xf32> to vector<16x96xf32>
    %7 = arith.addf %2, %6 : vector<16x96xf32>
    %c0_5 = arith.constant 0 : index
    %c0_6 = arith.constant 0 : index
    %c0_7 = arith.constant 0 : index
    %8 = vector.load %arg6[%c0_5, %c0_6, %c0_7] : memref<4x8x8xf32, #tpu.memory_space<vmem>>, vector<4x8x8xf32>
    %9 = vector.extract_strided_slice %7 {offsets = [0, 0], sizes = [16, 32], strides = [1, 1]} : vector<16x96xf32> to vector<16x32xf32>
    %10 = vector.shape_cast %9 : vector<16x32xf32> to vector<2x8x4x8xf32>
    %11 = vector.extract_strided_slice %7 {offsets = [0, 32], sizes = [16, 32], strides = [1, 1]} : vector<16x96xf32> to vector<16x32xf32>
    %12 = vector.shape_cast %11 : vector<16x32xf32> to vector<2x8x4x8xf32>
    %13 = vector.extract_strided_slice %7 {offsets = [0, 64], sizes = [16, 32], strides = [1, 1]} : vector<16x96xf32> to vector<16x32xf32>
    %14 = vector.shape_cast %13 : vector<16x32xf32> to vector<2x8x4x8xf32>
    %15 = vector.extract_strided_slice %10 {offsets = [0, 0, 0, 0], sizes = [2, 8, 1, 8], strides = [1, 1, 1, 1]} : vector<2x8x4x8xf32> to vector<2x8x1x8xf32>
    %16 = vector.shape_cast %15 : vector<2x8x1x8xf32> to vector<2x8x8xf32>
    %17 = vector.extract_strided_slice %12 {offsets = [0, 0, 0, 0], sizes = [2, 8, 1, 8], strides = [1, 1, 1, 1]} : vector<2x8x4x8xf32> to vector<2x8x1x8xf32>
    %18 = vector.shape_cast %17 : vector<2x8x1x8xf32> to vector<2x8x8xf32>
    %19 = vector.extract_strided_slice %14 {offsets = [0, 0, 0, 0], sizes = [2, 8, 1, 8], strides = [1, 1, 1, 1]} : vector<2x8x4x8xf32> to vector<2x8x1x8xf32>
    %20 = vector.shape_cast %19 : vector<2x8x1x8xf32> to vector<2x8x8xf32>
    "tpu.trace_start"() <{level = 10 : i32, message = "bsd,btd->bst"}> : () -> ()
    %cst_8 = arith.constant dense<0.000000e+00> : vector<2x8x8xf32>
    %21 = tpu.matmul %16, %18, %cst_8 {dimension_numbers = #tpu.dot_dimension_numbers<[2], [2], [1], [1], [0, 0, 0, 1, 1, 1], [0], [0]>} : vector<2x8x8xf32>, vector<2x8x8xf32>, vector<2x8x8xf32> -> vector<2x8x8xf32>
    "tpu.trace_stop"() : () -> ()
    %22 = vector.extract_strided_slice %8 {offsets = [0, 0, 0], sizes = [1, 8, 8], strides = [1, 1, 1]} : vector<4x8x8xf32> to vector<1x8x8xf32>
    %23 = vector.shape_cast %22 : vector<1x8x8xf32> to vector<8x8xf32>
    %24 = vector.shape_cast %23 : vector<8x8xf32> to vector<1x8x8xf32>
    %25 = vector.broadcast %24 : vector<1x8x8xf32> to vector<2x8x8xf32>
    %26 = arith.addf %21, %25 : vector<2x8x8xf32>
    %cst_9 = arith.constant dense<0xFF800000> : vector<2x8xf32>
    %27 = vector.multi_reduction <maximumf>, %26, %cst_9 [2] : vector<2x8x8xf32> to vector<2x8xf32>
    %28 = vector.shape_cast %27 : vector<2x8xf32> to vector<2x8x1xf32>
    %29 = vector.broadcast %28 : vector<2x8x1xf32> to vector<2x8x8xf32>
    %30 = arith.subf %26, %29 : vector<2x8x8xf32>
    %31 = math.exp %30 : vector<2x8x8xf32>
    %cst_10 = arith.constant dense<0.000000e+00> : vector<2x8xf32>
    %32 = vector.multi_reduction <add>, %31, %cst_10 [2] : vector<2x8x8xf32> to vector<2x8xf32>
    %33 = vector.shape_cast %32 : vector<2x8xf32> to vector<2x8x1xf32>
    %34 = tpu.reciprocal %33 : vector<2x8x1xf32> -> vector<2x8x1xf32>
    %35 = vector.broadcast %34 : vector<2x8x1xf32> to vector<2x8x8xf32>
    %36 = arith.mulf %31, %35 : vector<2x8x8xf32>
    "tpu.trace_start"() <{level = 10 : i32, message = "bst,btd->bsd"}> : () -> ()
    %cst_11 = arith.constant dense<0.000000e+00> : vector<2x8x8xf32>
    %37 = tpu.matmul %36, %20, %cst_11 {dimension_numbers = #tpu.dot_dimension_numbers<[2], [1], [1], [2], [0, 0, 0, 1, 1, 2], [0], [0]>} : vector<2x8x8xf32>, vector<2x8x8xf32>, vector<2x8x8xf32> -> vector<2x8x8xf32>
    "tpu.trace_stop"() : () -> ()
    %38 = vector.shape_cast %37 : vector<2x8x8xf32> to vector<16x8xf32>
    %c0_12 = arith.constant 0 : index
    %c0_13 = arith.constant 0 : index
    %39 = vector.load %arg8[%c0_12, %c0_13] : memref<16x32xf32, #tpu.memory_space<vmem>>, vector<16x8xf32>
    tpu.vector_store %arg8[%c0_12, %c0_13], %38 {strides = array<i32>} : memref<16x32xf32, #tpu.memory_space<vmem>>, vector<16x8xf32>,
    %40 = vector.extract_strided_slice %10 {offsets = [0, 0, 1, 0], sizes = [2, 8, 1, 8], strides = [1, 1, 1, 1]} : vector<2x8x4x8xf32> to vector<2x8x1x8xf32>
    %41 = vector.shape_cast %40 : vector<2x8x1x8xf32> to vector<2x8x8xf32>
    %42 = vector.extract_strided_slice %12 {offsets = [0, 0, 1, 0], sizes = [2, 8, 1, 8], strides = [1, 1, 1, 1]} : vector<2x8x4x8xf32> to vector<2x8x1x8xf32>
    %43 = vector.shape_cast %42 : vector<2x8x1x8xf32> to vector<2x8x8xf32>
    %44 = vector.extract_strided_slice %14 {offsets = [0, 0, 1, 0], sizes = [2, 8, 1, 8], strides = [1, 1, 1, 1]} : vector<2x8x4x8xf32> to vector<2x8x1x8xf32>
    %45 = vector.shape_cast %44 : vector<2x8x1x8xf32> to vector<2x8x8xf32>
    "tpu.trace_start"() <{level = 10 : i32, message = "bsd,btd->bst"}> : () -> ()
    %cst_14 = arith.constant dense<0.000000e+00> : vector<2x8x8xf32>
    %46 = tpu.matmul %41, %43, %cst_14 {dimension_numbers = #tpu.dot_dimension_numbers<[2], [2], [1], [1], [0, 0, 0, 1, 1, 1], [0], [0]>} : vector<2x8x8xf32>, vector<2x8x8xf32>, vector<2x8x8xf32> -> vector<2x8x8xf32>
    "tpu.trace_stop"() : () -> ()
    %47 = vector.extract_strided_slice %8 {offsets = [1, 0, 0], sizes = [1, 8, 8], strides = [1, 1, 1]} : vector<4x8x8xf32> to vector<1x8x8xf32>
    %48 = vector.shape_cast %47 : vector<1x8x8xf32> to vector<8x8xf32>
    %49 = vector.shape_cast %48 : vector<8x8xf32> to vector<1x8x8xf32>
    %50 = vector.broadcast %49 : vector<1x8x8xf32> to vector<2x8x8xf32>
    %51 = arith.addf %46, %50 : vector<2x8x8xf32>
    %cst_15 = arith.constant dense<0xFF800000> : vector<2x8xf32>
    %52 = vector.multi_reduction <maximumf>, %51, %cst_15 [2] : vector<2x8x8xf32> to vector<2x8xf32>
    %53 = vector.shape_cast %52 : vector<2x8xf32> to vector<2x8x1xf32>
    %54 = vector.broadcast %53 : vector<2x8x1xf32> to vector<2x8x8xf32>
    %55 = arith.subf %51, %54 : vector<2x8x8xf32>
    %56 = math.exp %55 : vector<2x8x8xf32>
    %cst_16 = arith.constant dense<0.000000e+00> : vector<2x8xf32>
    %57 = vector.multi_reduction <add>, %56, %cst_16 [2] : vector<2x8x8xf32> to vector<2x8xf32>
    %58 = vector.shape_cast %57 : vector<2x8xf32> to vector<2x8x1xf32>
    %59 = tpu.reciprocal %58 : vector<2x8x1xf32> -> vector<2x8x1xf32>
    %60 = vector.broadcast %59 : vector<2x8x1xf32> to vector<2x8x8xf32>
    %61 = arith.mulf %56, %60 : vector<2x8x8xf32>
    "tpu.trace_start"() <{level = 10 : i32, message = "bst,btd->bsd"}> : () -> ()
    %cst_17 = arith.constant dense<0.000000e+00> : vector<2x8x8xf32>
    %62 = tpu.matmul %61, %45, %cst_17 {dimension_numbers = #tpu.dot_dimension_numbers<[2], [1], [1], [2], [0, 0, 0, 1, 1, 2], [0], [0]>} : vector<2x8x8xf32>, vector<2x8x8xf32>, vector<2x8x8xf32> -> vector<2x8x8xf32>
    "tpu.trace_stop"() : () -> ()
    %63 = vector.shape_cast %62 : vector<2x8x8xf32> to vector<16x8xf32>
    %c0_18 = arith.constant 0 : index
    %c8 = arith.constant 8 : index
    %64 = vector.load %arg8[%c0_18, %c8] : memref<16x32xf32, #tpu.memory_space<vmem>>, vector<16x8xf32>
    tpu.vector_store %arg8[%c0_18, %c8], %63 {strides = array<i32>} : memref<16x32xf32, #tpu.memory_space<vmem>>, vector<16x8xf32>,
    %65 = vector.extract_strided_slice %10 {offsets = [0, 0, 2, 0], sizes = [2, 8, 1, 8], strides = [1, 1, 1, 1]} : vector<2x8x4x8xf32> to vector<2x8x1x8xf32>
    %66 = vector.shape_cast %65 : vector<2x8x1x8xf32> to vector<2x8x8xf32>
    %67 = vector.extract_strided_slice %12 {offsets = [0, 0, 2, 0], sizes = [2, 8, 1, 8], strides = [1, 1, 1, 1]} : vector<2x8x4x8xf32> to vector<2x8x1x8xf32>
    %68 = vector.shape_cast %67 : vector<2x8x1x8xf32> to vector<2x8x8xf32>
    %69 = vector.extract_strided_slice %14 {offsets = [0, 0, 2, 0], sizes = [2, 8, 1, 8], strides = [1, 1, 1, 1]} : vector<2x8x4x8xf32> to vector<2x8x1x8xf32>
    %70 = vector.shape_cast %69 : vector<2x8x1x8xf32> to vector<2x8x8xf32>
    "tpu.trace_start"() <{level = 10 : i32, message = "bsd,btd->bst"}> : () -> ()
    %cst_19 = arith.constant dense<0.000000e+00> : vector<2x8x8xf32>
    %71 = tpu.matmul %66, %68, %cst_19 {dimension_numbers = #tpu.dot_dimension_numbers<[2], [2], [1], [1], [0, 0, 0, 1, 1, 1], [0], [0]>} : vector<2x8x8xf32>, vector<2x8x8xf32>, vector<2x8x8xf32> -> vector<2x8x8xf32>
    "tpu.trace_stop"() : () -> ()
    %72 = vector.extract_strided_slice %8 {offsets = [2, 0, 0], sizes = [1, 8, 8], strides = [1, 1, 1]} : vector<4x8x8xf32> to vector<1x8x8xf32>
    %73 = vector.shape_cast %72 : vector<1x8x8xf32> to vector<8x8xf32>
    %74 = vector.shape_cast %73 : vector<8x8xf32> to vector<1x8x8xf32>
    %75 = vector.broadcast %74 : vector<1x8x8xf32> to vector<2x8x8xf32>
    %76 = arith.addf %71, %75 : vector<2x8x8xf32>
    %cst_20 = arith.constant dense<0xFF800000> : vector<2x8xf32>
    %77 = vector.multi_reduction <maximumf>, %76, %cst_20 [2] : vector<2x8x8xf32> to vector<2x8xf32>
    %78 = vector.shape_cast %77 : vector<2x8xf32> to vector<2x8x1xf32>
    %79 = vector.broadcast %78 : vector<2x8x1xf32> to vector<2x8x8xf32>
    %80 = arith.subf %76, %79 : vector<2x8x8xf32>
    %81 = math.exp %80 : vector<2x8x8xf32>
    %cst_21 = arith.constant dense<0.000000e+00> : vector<2x8xf32>
    %82 = vector.multi_reduction <add>, %81, %cst_21 [2] : vector<2x8x8xf32> to vector<2x8xf32>
    %83 = vector.shape_cast %82 : vector<2x8xf32> to vector<2x8x1xf32>
    %84 = tpu.reciprocal %83 : vector<2x8x1xf32> -> vector<2x8x1xf32>
    %85 = vector.broadcast %84 : vector<2x8x1xf32> to vector<2x8x8xf32>
    %86 = arith.mulf %81, %85 : vector<2x8x8xf32>
    "tpu.trace_start"() <{level = 10 : i32, message = "bst,btd->bsd"}> : () -> ()
    %cst_22 = arith.constant dense<0.000000e+00> : vector<2x8x8xf32>
    %87 = tpu.matmul %86, %70, %cst_22 {dimension_numbers = #tpu.dot_dimension_numbers<[2], [1], [1], [2], [0, 0, 0, 1, 1, 2], [0], [0]>} : vector<2x8x8xf32>, vector<2x8x8xf32>, vector<2x8x8xf32> -> vector<2x8x8xf32>
    "tpu.trace_stop"() : () -> ()
    %88 = vector.shape_cast %87 : vector<2x8x8xf32> to vector<16x8xf32>
    %c0_23 = arith.constant 0 : index
    %c16 = arith.constant 16 : index
    %89 = vector.load %arg8[%c0_23, %c16] : memref<16x32xf32, #tpu.memory_space<vmem>>, vector<16x8xf32>
    tpu.vector_store %arg8[%c0_23, %c16], %88 {strides = array<i32>} : memref<16x32xf32, #tpu.memory_space<vmem>>, vector<16x8xf32>,
    %90 = vector.extract_strided_slice %10 {offsets = [0, 0, 3, 0], sizes = [2, 8, 1, 8], strides = [1, 1, 1, 1]} : vector<2x8x4x8xf32> to vector<2x8x1x8xf32>
    %91 = vector.shape_cast %90 : vector<2x8x1x8xf32> to vector<2x8x8xf32>
    %92 = vector.extract_strided_slice %12 {offsets = [0, 0, 3, 0], sizes = [2, 8, 1, 8], strides = [1, 1, 1, 1]} : vector<2x8x4x8xf32> to vector<2x8x1x8xf32>
    %93 = vector.shape_cast %92 : vector<2x8x1x8xf32> to vector<2x8x8xf32>
    %94 = vector.extract_strided_slice %14 {offsets = [0, 0, 3, 0], sizes = [2, 8, 1, 8], strides = [1, 1, 1, 1]} : vector<2x8x4x8xf32> to vector<2x8x1x8xf32>
    %95 = vector.shape_cast %94 : vector<2x8x1x8xf32> to vector<2x8x8xf32>
    "tpu.trace_start"() <{level = 10 : i32, message = "bsd,btd->bst"}> : () -> ()
    %cst_24 = arith.constant dense<0.000000e+00> : vector<2x8x8xf32>
    %96 = tpu.matmul %91, %93, %cst_24 {dimension_numbers = #tpu.dot_dimension_numbers<[2], [2], [1], [1], [0, 0, 0, 1, 1, 1], [0], [0]>} : vector<2x8x8xf32>, vector<2x8x8xf32>, vector<2x8x8xf32> -> vector<2x8x8xf32>
    "tpu.trace_stop"() : () -> ()
    %97 = vector.extract_strided_slice %8 {offsets = [3, 0, 0], sizes = [1, 8, 8], strides = [1, 1, 1]} : vector<4x8x8xf32> to vector<1x8x8xf32>
    %98 = vector.shape_cast %97 : vector<1x8x8xf32> to vector<8x8xf32>
    %99 = vector.shape_cast %98 : vector<8x8xf32> to vector<1x8x8xf32>
    %100 = vector.broadcast %99 : vector<1x8x8xf32> to vector<2x8x8xf32>
    %101 = arith.addf %96, %100 : vector<2x8x8xf32>
    %cst_25 = arith.constant dense<0xFF800000> : vector<2x8xf32>
    %102 = vector.multi_reduction <maximumf>, %101, %cst_25 [2] : vector<2x8x8xf32> to vector<2x8xf32>
    %103 = vector.shape_cast %102 : vector<2x8xf32> to vector<2x8x1xf32>
    %104 = vector.broadcast %103 : vector<2x8x1xf32> to vector<2x8x8xf32>
    %105 = arith.subf %101, %104 : vector<2x8x8xf32>
    %106 = math.exp %105 : vector<2x8x8xf32>
    %cst_26 = arith.constant dense<0.000000e+00> : vector<2x8xf32>
    %107 = vector.multi_reduction <add>, %106, %cst_26 [2] : vector<2x8x8xf32> to vector<2x8xf32>
    %108 = vector.shape_cast %107 : vector<2x8xf32> to vector<2x8x1xf32>
    %109 = tpu.reciprocal %108 : vector<2x8x1xf32> -> vector<2x8x1xf32>
    %110 = vector.broadcast %109 : vector<2x8x1xf32> to vector<2x8x8xf32>
    %111 = arith.mulf %106, %110 : vector<2x8x8xf32>
    "tpu.trace_start"() <{level = 10 : i32, message = "bst,btd->bsd"}> : () -> ()
    %cst_27 = arith.constant dense<0.000000e+00> : vector<2x8x8xf32>
    %112 = tpu.matmul %111, %95, %cst_27 {dimension_numbers = #tpu.dot_dimension_numbers<[2], [1], [1], [2], [0, 0, 0, 1, 1, 2], [0], [0]>} : vector<2x8x8xf32>, vector<2x8x8xf32>, vector<2x8x8xf32> -> vector<2x8x8xf32>
    "tpu.trace_stop"() : () -> ()
    %113 = vector.shape_cast %112 : vector<2x8x8xf32> to vector<16x8xf32>
    %c0_28 = arith.constant 0 : index
    %c24 = arith.constant 24 : index
    %114 = vector.load %arg8[%c0_28, %c24] : memref<16x32xf32, #tpu.memory_space<vmem>>, vector<16x8xf32>
    tpu.vector_store %arg8[%c0_28, %c24], %113 {strides = array<i32>} : memref<16x32xf32, #tpu.memory_space<vmem>>, vector<16x8xf32>,
    %c0_29 = arith.constant 0 : index
    %c0_30 = arith.constant 0 : index
    %115 = vector.load %arg8[%c0_29, %c0_30] : memref<16x32xf32, #tpu.memory_space<vmem>>, vector<16x32xf32>
    %c0_31 = arith.constant 0 : index
    %c0_32 = arith.constant 0 : index
    %116 = vector.load %arg4[%c0_31, %c0_32] : memref<32x32xf32, #tpu.memory_space<vmem>>, vector<32x32xf32>
    %cst_33 = arith.constant dense<0.000000e+00> : vector<16x32xf32>
    %117 = tpu.matmul %115, %116, %cst_33 {dimension_numbers = #tpu.dot_dimension_numbers<[1], [0], [0], [1], [0, 0, 1, 1], [], []>} : vector<16x32xf32>, vector<32x32xf32>, vector<16x32xf32> -> vector<16x32xf32>
    %c0_34 = arith.constant 0 : index
    %c0_35 = arith.constant 0 : index
    %118 = vector.load %arg5[%c0_34, %c0_35] : memref<1x32xf32, #tpu.memory_space<vmem>>, vector<1x32xf32>
    %119 = vector.shape_cast %118 : vector<1x32xf32> to vector<32xf32>
    %120 = vector.shape_cast %119 : vector<32xf32> to vector<1x32xf32>
    %121 = vector.broadcast %120 : vector<1x32xf32> to vector<16x32xf32>
    %122 = arith.addf %117, %121 : vector<16x32xf32>
    %c0_36 = arith.constant 0 : index
    %c0_37 = arith.constant 0 : index
    %123 = vector.load %arg7[%c0_36, %c0_37] : memref<16x32xf32, #tpu.memory_space<vmem>>, vector<16x32xf32>
    tpu.vector_store %arg7[%c0_36, %c0_37], %122 {strides = array<i32>} : memref<16x32xf32, #tpu.memory_space<vmem>>, vector<16x32xf32>,
    return
  }
  func.func @transform_0(%arg0: i32) -> (i32, i32) {
    %c0_i32 = arith.constant 0 : i32
    %c0_i32_0 = arith.constant 0 : i32
    return %arg0, %c0_i32 : i32, i32
  }
  func.func @transform_1(%arg0: i32) -> (i32, i32) {
    %c0_i32 = arith.constant 0 : i32
    %c0_i32_0 = arith.constant 0 : i32
    %c0_i32_1 = arith.constant 0 : i32
    return %c0_i32, %c0_i32_0 : i32, i32
  }
  func.func @transform_2(%arg0: i32) -> (i32, i32) {
    %c0_i32 = arith.constant 0 : i32
    %c0_i32_0 = arith.constant 0 : i32
    %c0_i32_1 = arith.constant 0 : i32
    return %c0_i32, %c0_i32_0 : i32, i32
  }
  func.func @transform_3(%arg0: i32) -> (i32, i32) {
    %c0_i32 = arith.constant 0 : i32
    %c0_i32_0 = arith.constant 0 : i32
    %c0_i32_1 = arith.constant 0 : i32
    return %c0_i32, %c0_i32_0 : i32, i32
  }
  func.func @transform_4(%arg0: i32) -> (i32, i32) {
    %c0_i32 = arith.constant 0 : i32
    %c0_i32_0 = arith.constant 0 : i32
    %c0_i32_1 = arith.constant 0 : i32
    return %c0_i32, %c0_i32_0 : i32, i32
  }
  func.func @transform_5(%arg0: i32) -> (i32, i32, i32) {
    %c0_i32 = arith.constant 0 : i32
    %c0_i32_0 = arith.constant 0 : i32
    %c0_i32_1 = arith.constant 0 : i32
    %c0_i32_2 = arith.constant 0 : i32
    return %c0_i32, %c0_i32_0, %c0_i32_1 : i32, i32, i32
  }
  func.func @transform_6(%arg0: i32) -> (i32, i32) {
    %c0_i32 = arith.constant 0 : i32
    %c0_i32_0 = arith.constant 0 : i32
    return %arg0, %c0_i32 : i32, i32
  }
}

</mosaic_0001>

<llo_original>
// kernel: tpu_custom_call.1
$region0: #{tpu_custom_call.1}
  #allocation0 [shape = 'u32[]', space=smem, size = 0x4, offset = 0x4, fixed_abs, tag = 'smem constant byte address 0x4 - core index']
  #allocation1 [shape = 'u32[72,128]{1,0:T(1,128)}', space=vmem, size = 0x9000, scoped, tag = 'internal scratch']
  #allocation2 [shape = 'f32[16,32]{1,0:T(8,128)}', space=vmem, size = 0x2000, scoped, tag = 'scratch operand']
  %s0 = inlined_call_operand.hbm [shape: f32[16,32], index: 0, kind: input, shape index: {}]
  %s1 = inlined_call_operand.hbm [shape: f32[32,96], index: 1, kind: input, shape index: {}]
  %s2 = inlined_call_operand.vmem [shape: f32[1,96], index: 2, kind: input, shape index: {}]
  %s3 = inlined_call_operand.hbm [shape: f32[32,32], index: 3, kind: input, shape index: {}]
  %s4 = inlined_call_operand.vmem [shape: f32[1,32], index: 4, kind: input, shape index: {}]
  %s5 = inlined_call_operand.hbm [shape: f32[4,8,8], index: 5, kind: input, shape index: {}]
  %s6 = inlined_call_operand.hbm [shape: f32[16,32], index: 6, kind: output, shape index: {}]
  %s7 = sld [smem:[#allocation0]]
  $region50: #{tpu_custom_call.1} parent=0
    _
  %s9 = ssub.s32 1, %s7
  %s10 = scalar_select 0, %s9, %s7
  $region1: #{tpu_custom_call.1} parent=0
    #allocation3 [shape = 'u8[8192]{0}', space=vmem, size = 0x2000, scoped, tag = 'input window, operand 0, single buffered']
    #allocation4 [shape = 's32[1]{0}', space=sflag, size = 0x4, scoped, tag = 'scoped memory for tpu_custom_call.1']
    #allocation5 [shape = 's32[1]{0}', space=sflag, size = 0x4, scoped, tag = 'scoped memory for tpu_custom_call.1']
    #allocation6 [shape = 'u8[16384]{0}', space=vmem, size = 0x4000, scoped, tag = 'input window, operand 1, single buffered']
    #allocation7 [shape = 's32[1]{0}', space=sflag, size = 0x4, scoped, tag = 'scoped memory for tpu_custom_call.1']
    #allocation8 [shape = 'u8[16384]{0}', space=vmem, size = 0x4000, scoped, tag = 'input window, operand 3, single buffered']
    #allocation9 [shape = 'u8[16384]{0}', space=vmem, size = 0x4000, scoped, tag = 'input window, operand 5, single buffered']
    #allocation10 [shape = 's32[1]{0}', space=sflag, size = 0x4, scoped, tag = 'scoped memory for tpu_custom_call.1']
    #allocation11 [shape = 'u8[8192]{0}', space=vmem, size = 0x2000, scoped, tag = 'output window, operand 0, single buffered']
    %11 = vsyncpa [#allocation4], 0
    %12 = vsyncpa [#allocation7], 0
    %13 = vsyncpa [#allocation10], 0
    %14 = vsyncpa [#allocation5], 0
    // Predicated region
    $region2: #{tpu_custom_call.1} parent=1 // pred_check
      _
    $region3: #{tpu_custom_call.1} parent=1 // pred_check_branch
      %16 = sbr.rel (0) target = $region5
    $region4: #{tpu_custom_call.1} parent=1 // pred_region
      %18 = vsyncadd [#allocation4], 0
      %s19 = sshll.u32 %s0, 4
      %s20 = int_to_ptr.hbm [resolvable:$true] %s19
      %s21 = sshll.u32 [#allocation3], 4
      %s22 = int_to_ptr.vmem [resolvable:$true] %s21
      %27 = dma.hbm_to_vmem [thread:$0]  %s20, 256, %s22, [#allocation4], 128, 128, 8
    $region5: #{tpu_custom_call.1} parent=1 // pred_fallthru
      _
    // Predicated region
    $region6: #{tpu_custom_call.1} parent=1 // pred_check
      _
    $region7: #{tpu_custom_call.1} parent=1 // pred_check_branch
      %29 = sbr.rel (0) target = $region9
    $region8: #{tpu_custom_call.1} parent=1 // pred_region
      %31 = vsyncadd [#allocation7], 0
      %s32 = sshll.u32 %s1, 4
      %s33 = int_to_ptr.hbm [resolvable:$true] %s32
      %s34 = sshll.u32 [#allocation6], 4
      %s35 = int_to_ptr.vmem [resolvable:$true] %s34
      %40 = dma.hbm_to_vmem [thread:$0]  %s33, 512, %s35, [#allocation7], 128, 128, 8
    $region9: #{tpu_custom_call.1} parent=1 // pred_fallthru
      _
    // Predicated region
    $region10: #{tpu_custom_call.1} parent=1 // pred_check
      _
    $region11: #{tpu_custom_call.1} parent=1 // pred_check_branch
      %42 = sbr.rel (0) target = $region13
    $region12: #{tpu_custom_call.1} parent=1 // pred_region
      _
    $region13: #{tpu_custom_call.1} parent=1 // pred_fallthru
      _
    // Predicated region
    $region14: #{tpu_custom_call.1} parent=1 // pred_check
      _
    $region15: #{tpu_custom_call.1} parent=1 // pred_check_branch
      %44 = sbr.rel (0) target = $region17
    $region16: #{tpu_custom_call.1} parent=1 // pred_region
      %46 = vsyncadd [#allocation7], 0
      %s47 = sshll.u32 %s3, 4
      %s48 = int_to_ptr.hbm [resolvable:$true] %s47
      %s49 = sshll.u32 [#allocation8], 4
      %s50 = int_to_ptr.vmem [resolvable:$true] %s49
      %55 = dma.hbm_to_vmem [thread:$0]  %s48, 512, %s50, [#allocation7], 128, 128, 8
    $region17: #{tpu_custom_call.1} parent=1 // pred_fallthru
      _
    // Predicated region
    $region18: #{tpu_custom_call.1} parent=1 // pred_check
      _
    $region19: #{tpu_custom_call.1} parent=1 // pred_check_branch
      %57 = sbr.rel (0) target = $region21
    $region20: #{tpu_custom_call.1} parent=1 // pred_region
      _
    $region21: #{tpu_custom_call.1} parent=1 // pred_fallthru
      _
    // Predicated region
    $region22: #{tpu_custom_call.1} parent=1 // pred_check
      _
    $region23: #{tpu_custom_call.1} parent=1 // pred_check_branch
      %59 = sbr.rel (0) target = $region25
    $region24: #{tpu_custom_call.1} parent=1 // pred_region
      %61 = vsyncadd [#allocation10], 0
      %s62 = sshll.u32 %s5, 4
      %s63 = int_to_ptr.hbm [resolvable:$true] %s62
      %s64 = sshll.u32 [#allocation9], 4
      %s65 = int_to_ptr.vmem [resolvable:$true] %s64
      %70 = dma.hbm_to_vmem [thread:$0]  %s63, 512, %s65, [#allocation10], 128, 128, 8
    $region25: #{tpu_custom_call.1} parent=1 // pred_fallthru
      _
    // Predicated region
    $region26: #{tpu_custom_call.1} parent=1 // pred_check
      _
    $region27: #{tpu_custom_call.1} parent=1 // pred_check_branch
      %72 = sbr.rel (0) target = $region29
    $region28: #{tpu_custom_call.1} parent=1 // pred_region
      %74 = dma.done [#allocation4], 256
    $region29: #{tpu_custom_call.1} parent=1 // pred_fallthru
      _
    // Predicated region
    $region30: #{tpu_custom_call.1} parent=1 // pred_check
      _
    $region31: #{tpu_custom_call.1} parent=1 // pred_check_branch
      %76 = sbr.rel (0) target = $region33
    $region32: #{tpu_custom_call.1} parent=1 // pred_region
      %78 = dma.done [#allocation7], 512
    $region33: #{tpu_custom_call.1} parent=1 // pred_fallthru
      _
    // Predicated region
    $region34: #{tpu_custom_call.1} parent=1 // pred_check
      _
    $region35: #{tpu_custom_call.1} parent=1 // pred_check_branch
      %80 = sbr.rel (0) target = $region37
    $region36: #{tpu_custom_call.1} parent=1 // pred_region
      %82 = dma.done [#allocation7], 512
    $region37: #{tpu_custom_call.1} parent=1 // pred_fallthru
      _
    // Predicated region
    $region38: #{tpu_custom_call.1} parent=1 // pred_check
      _
    $region39: #{tpu_custom_call.1} parent=1 // pred_check_branch
      %84 = sbr.rel (0) target = $region41
    $region40: #{tpu_custom_call.1} parent=1 // pred_region
      %86 = dma.done [#allocation10], 512
    $region41: #{tpu_custom_call.1} parent=1 // pred_fallthru
      _
    %v87 = vld [vmem:[#allocation3] sm:$0xff]
    %v88 = vld [vmem:[#allocation3 + $0x8] sm:$0xff]
    %v89 = vld [vmem:[#allocation6] sm:$0xff]
    %v90 = vld [vmem:[#allocation6 + $0x8] sm:$0xff]
    %v91 = vld [vmem:[#allocation6 + $0x10] sm:$0xff]
    %v92 = vld [vmem:[#allocation6 + $0x18] sm:$0xff]
    %v93 = vld [vmem:[%s2] sm:$0x1]
    %v95 = vperm.slane %v93, 0
    %vm97 = vcmask 261120
    %v99 = vsel %vm97, %v87, 0
    %v102 = vsel %vm97, %v88, 0
    %104 = vmatpush.msra.mxu0 0.0
    %105 = vmatpush.msra.mxu0 0.0
    %106 = vmatpush.msra.mxu0 0.0
    %107 = vmatpush.msra.mxu0 0.0
    %108 = vmatpush.msra.mxu0 0.0
    %109 = vmatpush.msra.mxu0 0.0
    %110 = vmatpush.msra.mxu0 0.0
    %111 = vmatpush.msra.mxu0 0.0
    %112 = vmatpush.msra.mxu0 0.0
    %113 = vmatpush.msra.mxu0 0.0
    %114 = vmatpush.msra.mxu0 0.0
    %115 = vmatpush.msra.mxu0 0.0
    %116 = vmatpush.msra.mxu0 %v92
    %117 = vmatpush.msra.mxu0 %v91
    %118 = vmatpush.msra.mxu0 %v90
    %119 = vmatpush.msra.mxu0 %v89
    %120 = vmatmul.f32.gmra.mxu0 %v99
    %v121 = vpop.f32.mrf.mxu0
    %v122 = vadd.f32 %v95, %v121
    %123 = vmatmul.f32.gmra.mxu0 %v102
    %v124 = vpop.f32.mrf.mxu0
    %v125 = vadd.f32 %v95, %v124
    %126 = vdwg.mxu0
    %v127 = vld [vmem:[#allocation9] sm:$0xff]
    %v128 = vld [vmem:[#allocation9 + $0x8] sm:$0xff]
    %v129 = vld [vmem:[#allocation9 + $0x10] sm:$0xff]
    %v130 = vld [vmem:[#allocation9 + $0x18] sm:$0xff]
    %133 = vrot.lane.b32.xlu0 %v122, 120
    %v134 = vpop.permute.xlu0 %133
    %135 = vrot.lane.b32.xlu0 %v125, 120
    %v136 = vpop.permute.xlu0 %135
    %139 = vrot.lane.b32.xlu0 %v122, 112
    %v140 = vpop.permute.xlu0 %139
    %141 = vrot.lane.b32.xlu0 %v125, 112
    %v142 = vpop.permute.xlu0 %141
    %145 = vrot.lane.b32.xlu0 %v122, 104
    %v146 = vpop.permute.xlu0 %145
    %147 = vrot.lane.b32.xlu0 %v125, 104
    %v148 = vpop.permute.xlu0 %147
    %v151 = vrot.slane %v140, 4
    %vm152 = vcmask 1047556
    %v153 = vsel %vm152, %v151, %v122
    %v154 = vrot.slane %v122, 4
    %v155 = vsel %vm152, %v140, %v154
    %v157 = vunpack.c.l.s4 1983009808
    %v158 = vunpack.c.0.s8 %v157
    %v159 = vperm.slane %v153, %v158
    %v161 = vunpack.c.l.s4 1983009808
    %v162 = vunpack.c.0.s8 %v161
    %v163 = vperm.slane %v155, %v162
    %v164 = vrot.slane %v146, 4
    %v165 = vsel %vm152, %v164, %v134
    %v166 = vrot.slane %v134, 4
    %v167 = vsel %vm152, %v146, %v166
    %v169 = vunpack.c.l.s4 1983009808
    %v170 = vunpack.c.0.s8 %v169
    %v171 = vperm.slane %v165, %v170
    %v173 = vunpack.c.l.s4 1983009808
    %v174 = vunpack.c.0.s8 %v173
    %v175 = vperm.slane %v167, %v174
    %v176 = vrot.slane %v171, 4
    %v177 = vsel %vm152, %v176, %v159
    %v178 = vrot.slane %v159, 4
    %v179 = vsel %vm152, %v171, %v178
    %v181 = vunpack.c.l.s4 1934713408
    %v182 = vunpack.c.0.s8 %v181
    %v183 = vperm.slane %v177, %v182
    %v185 = vunpack.c.l.s4 1934713408
    %v186 = vunpack.c.0.s8 %v185
    %v187 = vperm.slane %v179, %v186
    %v188 = vrot.slane %v175, 4
    %v189 = vsel %vm152, %v188, %v163
    %v190 = vrot.slane %v163, 4
    %v191 = vsel %vm152, %v175, %v190
    %v193 = vunpack.c.l.s4 1934713408
    %v194 = vunpack.c.0.s8 %v193
    %v195 = vperm.slane %v189, %v194
    %v197 = vunpack.c.l.s4 1934713408
    %v198 = vunpack.c.0.s8 %v197
    %v199 = vperm.slane %v191, %v198
    %v200 = vrot.slane %v183, 4
    %v201 = vsel %vm152, 0.0, %v200
    %v202 = vrot.slane %v187, 4
    %v203 = vsel %vm152, 0.0, %v202
    %v204 = vrot.slane %v195, 4
    %v205 = vsel %vm152, 0.0, %v204
    %v206 = vrot.slane %v199, 4
    %v207 = vsel %vm152, 0.0, %v206
    %v208 = vrot.slane %v142, 4
    %v209 = vsel %vm152, %v208, %v125
    %v210 = vrot.slane %v125, 4
    %v211 = vsel %vm152, %v142, %v210
    %v213 = vunpack.c.l.s4 1983009808
    %v214 = vunpack.c.0.s8 %v213
    %v215 = vperm.slane %v209, %v214
    %v217 = vunpack.c.l.s4 1983009808
    %v218 = vunpack.c.0.s8 %v217
    %v219 = vperm.slane %v211, %v218
    %v220 = vrot.slane %v148, 4
    %v221 = vsel %vm152, %v220, %v136
    %v222 = vrot.slane %v136, 4
    %v223 = vsel %vm152, %v148, %v222
    %v225 = vunpack.c.l.s4 1983009808
    %v226 = vunpack.c.0.s8 %v225
    %v227 = vperm.slane %v221, %v226
    %v229 = vunpack.c.l.s4 1983009808
    %v230 = vunpack.c.0.s8 %v229
    %v231 = vperm.slane %v223, %v230
    %v232 = vrot.slane %v227, 4
    %v233 = vsel %vm152, %v232, %v215
    %v234 = vrot.slane %v215, 4
    %v235 = vsel %vm152, %v227, %v234
    %v237 = vunpack.c.l.s4 1934713408
    %v238 = vunpack.c.0.s8 %v237
    %v239 = vperm.slane %v233, %v238
    %v241 = vunpack.c.l.s4 1934713408
    %v242 = vunpack.c.0.s8 %v241
    %v243 = vperm.slane %v235, %v242
    %v244 = vrot.slane %v231, 4
    %v245 = vsel %vm152, %v244, %v219
    %v246 = vrot.slane %v219, 4
    %v247 = vsel %vm152, %v231, %v246
    %v249 = vunpack.c.l.s4 1934713408
    %v250 = vunpack.c.0.s8 %v249
    %v251 = vperm.slane %v245, %v250
    %v253 = vunpack.c.l.s4 1934713408
    %v254 = vunpack.c.0.s8 %v253
    %v255 = vperm.slane %v247, %v254
    %v256 = vrot.slane %v239, 4
    %v257 = vsel %vm152, 0.0, %v256
    %v258 = vrot.slane %v243, 4
    %v259 = vsel %vm152, 0.0, %v258
    %v260 = vrot.slane %v251, 4
    %v261 = vsel %vm152, 0.0, %v260
    %v262 = vrot.slane %v255, 4
    %v263 = vsel %vm152, 0.0, %v262
    %264 = vrot.lane.b32.xlu0 %v122, 96
    %v265 = vpop.permute.xlu0 %264
    %266 = vrot.lane.b32.xlu0 %v125, 96
    %v267 = vpop.permute.xlu0 %266
    %268 = vrot.lane.b32.xlu0 %v134, 96
    %v269 = vpop.permute.xlu0 %268
    %270 = vrot.lane.b32.xlu0 %v136, 96
    %v271 = vpop.permute.xlu0 %270
    %272 = vrot.lane.b32.xlu0 %v140, 96
    %v273 = vpop.permute.xlu0 %272
    %274 = vrot.lane.b32.xlu0 %v142, 96
    %v275 = vpop.permute.xlu0 %274
    %276 = vrot.lane.b32.xlu0 %v146, 96
    %v277 = vpop.permute.xlu0 %276
    %278 = vrot.lane.b32.xlu0 %v148, 96
    %v279 = vpop.permute.xlu0 %278
    %v288 = vrot.slane %v273, 4
    %v289 = vsel %vm152, %v288, %v265
    %v290 = vrot.slane %v265, 4
    %v291 = vsel %vm152, %v273, %v290
    %v293 = vunpack.c.l.s4 1983009808
    %v294 = vunpack.c.0.s8 %v293
    %v295 = vperm.slane %v289, %v294
    %v297 = vunpack.c.l.s4 1983009808
    %v298 = vunpack.c.0.s8 %v297
    %v299 = vperm.slane %v291, %v298
    %v300 = vrot.slane %v277, 4
    %v301 = vsel %vm152, %v300, %v269
    %v302 = vrot.slane %v269, 4
    %v303 = vsel %vm152, %v277, %v302
    %v305 = vunpack.c.l.s4 1983009808
    %v306 = vunpack.c.0.s8 %v305
    %v307 = vperm.slane %v301, %v306
    %v309 = vunpack.c.l.s4 1983009808
    %v310 = vunpack.c.0.s8 %v309
    %v311 = vperm.slane %v303, %v310
    %v312 = vrot.slane %v307, 4
    %v313 = vsel %vm152, %v312, %v295
    %v314 = vrot.slane %v295, 4
    %v315 = vsel %vm152, %v307, %v314
    %v317 = vunpack.c.l.s4 1934713408
    %v318 = vunpack.c.0.s8 %v317
    %v319 = vperm.slane %v313, %v318
    %v321 = vunpack.c.l.s4 1934713408
    %v322 = vunpack.c.0.s8 %v321
    %v323 = vperm.slane %v315, %v322
    %v324 = vrot.slane %v311, 4
    %v325 = vsel %vm152, %v324, %v299
    %v326 = vrot.slane %v299, 4
    %v327 = vsel %vm152, %v311, %v326
    %v329 = vunpack.c.l.s4 1934713408
    %v330 = vunpack.c.0.s8 %v329
    %v331 = vperm.slane %v325, %v330
    %v333 = vunpack.c.l.s4 1934713408
    %v334 = vunpack.c.0.s8 %v333
    %v335 = vperm.slane %v327, %v334
    %v336 = vrot.slane %v319, 4
    %v337 = vsel %vm152, 0.0, %v336
    %v338 = vrot.slane %v323, 4
    %v339 = vsel %vm152, 0.0, %v338
    %v340 = vrot.slane %v331, 4
    %v341 = vsel %vm152, 0.0, %v340
    %v342 = vrot.slane %v335, 4
    %v343 = vsel %vm152, 0.0, %v342
    %v344 = vrot.slane %v275, 4
    %v345 = vsel %vm152, %v344, %v267
    %v346 = vrot.slane %v267, 4
    %v347 = vsel %vm152, %v275, %v346
    %v349 = vunpack.c.l.s4 1983009808
    %v350 = vunpack.c.0.s8 %v349
    %v351 = vperm.slane %v345, %v350
    %v353 = vunpack.c.l.s4 1983009808
    %v354 = vunpack.c.0.s8 %v353
    %v355 = vperm.slane %v347, %v354
    %v356 = vrot.slane %v279, 4
    %v357 = vsel %vm152, %v356, %v271
    %v358 = vrot.slane %v271, 4
    %v359 = vsel %vm152, %v279, %v358
    %v361 = vunpack.c.l.s4 1983009808
    %v362 = vunpack.c.0.s8 %v361
    %v363 = vperm.slane %v357, %v362
    %v365 = vunpack.c.l.s4 1983009808
    %v366 = vunpack.c.0.s8 %v365
    %v367 = vperm.slane %v359, %v366
    %v368 = vrot.slane %v363, 4
    %v369 = vsel %vm152, %v368, %v351
    %v370 = vrot.slane %v351, 4
    %v371 = vsel %vm152, %v363, %v370
    %v373 = vunpack.c.l.s4 1934713408
    %v374 = vunpack.c.0.s8 %v373
    %v375 = vperm.slane %v369, %v374
    %v377 = vunpack.c.l.s4 1934713408
    %v378 = vunpack.c.0.s8 %v377
    %v379 = vperm.slane %v371, %v378
    %v380 = vrot.slane %v367, 4
    %v381 = vsel %vm152, %v380, %v355
    %v382 = vrot.slane %v355, 4
    %v383 = vsel %vm152, %v367, %v382
    %v385 = vunpack.c.l.s4 1934713408
    %v386 = vunpack.c.0.s8 %v385
    %v387 = vperm.slane %v381, %v386
    %v389 = vunpack.c.l.s4 1934713408
    %v390 = vunpack.c.0.s8 %v389
    %v391 = vperm.slane %v383, %v390
    %v392 = vrot.slane %v375, 4
    %v393 = vsel %vm152, 0.0, %v392
    %v394 = vrot.slane %v379, 4
    %v395 = vsel %vm152, 0.0, %v394
    %v396 = vrot.slane %v387, 4
    %v397 = vsel %vm152, 0.0, %v396
    %v398 = vrot.slane %v391, 4
    %v399 = vsel %vm152, 0.0, %v398
    %400 = vrot.lane.b32.xlu0 %v122, 64
    %v401 = vpop.permute.xlu0 %400
    %402 = vrot.lane.b32.xlu0 %v125, 64
    %v403 = vpop.permute.xlu0 %402
    %404 = vrot.lane.b32.xlu0 %v134, 64
    %v405 = vpop.permute.xlu0 %404
    %406 = vrot.lane.b32.xlu0 %v136, 64
    %v407 = vpop.permute.xlu0 %406
    %408 = vrot.lane.b32.xlu0 %v140, 64
    %v409 = vpop.permute.xlu0 %408
    %410 = vrot.lane.b32.xlu0 %v142, 64
    %v411 = vpop.permute.xlu0 %410
    %412 = vrot.lane.b32.xlu0 %v146, 64
    %v413 = vpop.permute.xlu0 %412
    %414 = vrot.lane.b32.xlu0 %v148, 64
    %v415 = vpop.permute.xlu0 %414
    %v424 = vrot.slane %v409, 4
    %v425 = vsel %vm152, %v424, %v401
    %v426 = vrot.slane %v401, 4
    %v427 = vsel %vm152, %v409, %v426
    %v429 = vunpack.c.l.s4 1983009808
    %v430 = vunpack.c.0.s8 %v429
    %v431 = vperm.slane %v425, %v430
    %v433 = vunpack.c.l.s4 1983009808
    %v434 = vunpack.c.0.s8 %v433
    %v435 = vperm.slane %v427, %v434
    %v436 = vrot.slane %v413, 4
    %v437 = vsel %vm152, %v436, %v405
    %v438 = vrot.slane %v405, 4
    %v439 = vsel %vm152, %v413, %v438
    %v441 = vunpack.c.l.s4 1983009808
    %v442 = vunpack.c.0.s8 %v441
    %v443 = vperm.slane %v437, %v442
    %v445 = vunpack.c.l.s4 1983009808
    %v446 = vunpack.c.0.s8 %v445
    %v447 = vperm.slane %v439, %v446
    %v448 = vrot.slane %v443, 4
    %v449 = vsel %vm152, %v448, %v431
    %v450 = vrot.slane %v431, 4
    %v451 = vsel %vm152, %v443, %v450
    %v453 = vunpack.c.l.s4 1934713408
    %v454 = vunpack.c.0.s8 %v453
    %v455 = vperm.slane %v449, %v454
    %v457 = vunpack.c.l.s4 1934713408
    %v458 = vunpack.c.0.s8 %v457
    %v459 = vperm.slane %v451, %v458
    %v460 = vrot.slane %v447, 4
    %v461 = vsel %vm152, %v460, %v435
    %v462 = vrot.slane %v435, 4
    %v463 = vsel %vm152, %v447, %v462
    %v465 = vunpack.c.l.s4 1934713408
    %v466 = vunpack.c.0.s8 %v465
    %v467 = vperm.slane %v461, %v466
    %v469 = vunpack.c.l.s4 1934713408
    %v470 = vunpack.c.0.s8 %v469
    %v471 = vperm.slane %v463, %v470
    %v472 = vrot.slane %v455, 4
    %v473 = vsel %vm152, 0.0, %v472
    %v474 = vrot.slane %v459, 4
    %v475 = vsel %vm152, 0.0, %v474
    %v476 = vrot.slane %v467, 4
    %v477 = vsel %vm152, 0.0, %v476
    %v478 = vrot.slane %v471, 4
    %v479 = vsel %vm152, 0.0, %v478
    %v480 = vrot.slane %v411, 4
    %v481 = vsel %vm152, %v480, %v403
    %v482 = vrot.slane %v403, 4
    %v483 = vsel %vm152, %v411, %v482
    %v485 = vunpack.c.l.s4 1983009808
    %v486 = vunpack.c.0.s8 %v485
    %v487 = vperm.slane %v481, %v486
    %v489 = vunpack.c.l.s4 1983009808
    %v490 = vunpack.c.0.s8 %v489
    %v491 = vperm.slane %v483, %v490
    %v492 = vrot.slane %v415, 4
    %v493 = vsel %vm152, %v492, %v407
    %v494 = vrot.slane %v407, 4
    %v495 = vsel %vm152, %v415, %v494
    %v497 = vunpack.c.l.s4 1983009808
    %v498 = vunpack.c.0.s8 %v497
    %v499 = vperm.slane %v493, %v498
    %v501 = vunpack.c.l.s4 1983009808
    %v502 = vunpack.c.0.s8 %v501
    %v503 = vperm.slane %v495, %v502
    %v504 = vrot.slane %v499, 4
    %v505 = vsel %vm152, %v504, %v487
    %v506 = vrot.slane %v487, 4
    %v507 = vsel %vm152, %v499, %v506
    %v509 = vunpack.c.l.s4 1934713408
    %v510 = vunpack.c.0.s8 %v509
    %v511 = vperm.slane %v505, %v510
    %v513 = vunpack.c.l.s4 1934713408
    %v514 = vunpack.c.0.s8 %v513
    %v515 = vperm.slane %v507, %v514
    %v516 = vrot.slane %v503, 4
    %v517 = vsel %vm152, %v516, %v491
    %v518 = vrot.slane %v491, 4
    %v519 = vsel %vm152, %v503, %v518
    %v521 = vunpack.c.l.s4 1934713408
    %v522 = vunpack.c.0.s8 %v521
    %v523 = vperm.slane %v517, %v522
    %v525 = vunpack.c.l.s4 1934713408
    %v526 = vunpack.c.0.s8 %v525
    %v527 = vperm.slane %v519, %v526
    %v528 = vrot.slane %v511, 4
    %v529 = vsel %vm152, 0.0, %v528
    %v530 = vrot.slane %v515, 4
    %v531 = vsel %vm152, 0.0, %v530
    %v532 = vrot.slane %v523, 4
    %v533 = vsel %vm152, 0.0, %v532
    %v534 = vrot.slane %v527, 4
    %v535 = vsel %vm152, 0.0, %v534
    %v544 = vrot.slane %v201, 7
    %vm545 = vcmask 1041409
    %v546 = vsel %vm545, %v544, %v183
    %v547 = vrot.slane %v187, 6
    %vm548 = vcmask 1042434
    %v549 = vsel %vm548, %v547, %v546
    %v550 = vrot.slane %v203, 5
    %vm551 = vcmask 1043459
    %v552 = vsel %vm551, %v550, %v549
    %v553 = vrot.slane %v195, 4
    %vm554 = vcmask 1044484
    %v555 = vsel %vm554, %v553, %v552
    %v556 = vrot.slane %v205, 3
    %vm557 = vcmask 1045509
    %v558 = vsel %vm557, %v556, %v555
    %v559 = vrot.slane %v199, 2
    %vm560 = vcmask 1046534
    %v561 = vsel %vm560, %v559, %v558
    %v562 = vrot.slane %v207, 1
    %vm563 = vcmask 1047559
    %v564 = vsel %vm563, %v562, %v561
    %v573 = vrot.slane %v337, 7
    %v574 = vsel %vm545, %v573, %v319
    %v575 = vrot.slane %v323, 6
    %v576 = vsel %vm548, %v575, %v574
    %v577 = vrot.slane %v339, 5
    %v578 = vsel %vm551, %v577, %v576
    %v579 = vrot.slane %v331, 4
    %v580 = vsel %vm554, %v579, %v578
    %v581 = vrot.slane %v341, 3
    %v582 = vsel %vm557, %v581, %v580
    %v583 = vrot.slane %v335, 2
    %v584 = vsel %vm560, %v583, %v582
    %v585 = vrot.slane %v343, 1
    %v586 = vsel %vm563, %v585, %v584
    %vm587 = vcmask 64512
    %v588 = vsel %vm587, %v564, 0
    %v590 = vsel %vm587, %v586, 0
    %592 = vmatpush.xpose.msra.mxu0 0.0
    %593 = vmatpush.xpose.msra.mxu0 0.0
    %594 = vmatpush.xpose.msra.mxu0 0.0
    %595 = vmatpush.xpose.msra.mxu0 0.0
    %596 = vmatpush.xpose.msra.mxu0 0.0
    %597 = vmatpush.xpose.msra.mxu0 0.0
    %598 = vmatpush.xpose.msra.mxu0 0.0
    %599 = vmatpush.xpose.msra.mxu0 0.0
    %600 = vmatpush.xpose.msra.mxu0 0.0
    %601 = vmatpush.xpose.msra.mxu0 0.0
    %602 = vmatpush.xpose.msra.mxu0 0.0
    %603 = vmatpush.xpose.msra.mxu0 0.0
    %604 = vmatpush.xpose.msra.mxu0 0.0
    %605 = vmatpush.xpose.msra.mxu0 0.0
    %606 = vmatpush.xpose.msra.mxu0 0.0
    %607 = vmatpush.xpose.msra.mxu0 %v590
    %608 = vmatmul.f32.gmra.mxu0 %v588
    %v609 = vpop.f32.mrf.mxu0
    %v610 = vadd.f32 %v127, %v609
    %611 = vdwg.mxu0
    %v620 = vrot.slane %v257, 7
    %v621 = vsel %vm545, %v620, %v239
    %v622 = vrot.slane %v243, 6
    %v623 = vsel %vm548, %v622, %v621
    %v624 = vrot.slane %v259, 5
    %v625 = vsel %vm551, %v624, %v623
    %v626 = vrot.slane %v251, 4
    %v627 = vsel %vm554, %v626, %v625
    %v628 = vrot.slane %v261, 3
    %v629 = vsel %vm557, %v628, %v627
    %v630 = vrot.slane %v255, 2
    %v631 = vsel %vm560, %v630, %v629
    %v632 = vrot.slane %v263, 1
    %v633 = vsel %vm563, %v632, %v631
    %v642 = vrot.slane %v393, 7
    %v643 = vsel %vm545, %v642, %v375
    %v644 = vrot.slane %v379, 6
    %v645 = vsel %vm548, %v644, %v643
    %v646 = vrot.slane %v395, 5
    %v647 = vsel %vm551, %v646, %v645
    %v648 = vrot.slane %v387, 4
    %v649 = vsel %vm554, %v648, %v647
    %v650 = vrot.slane %v397, 3
    %v651 = vsel %vm557, %v650, %v649
    %v652 = vrot.slane %v391, 2
    %v653 = vsel %vm560, %v652, %v651
    %v654 = vrot.slane %v399, 1
    %v655 = vsel %vm563, %v654, %v653
    %v656 = vsel %vm587, %v633, 0
    %v658 = vsel %vm587, %v655, 0
    %660 = vmatpush.xpose.msra.mxu0 0.0
    %661 = vmatpush.xpose.msra.mxu0 0.0
    %662 = vmatpush.xpose.msra.mxu0 0.0
    %663 = vmatpush.xpose.msra.mxu0 0.0
    %664 = vmatpush.xpose.msra.mxu0 0.0
    %665 = vmatpush.xpose.msra.mxu0 0.0
    %666 = vmatpush.xpose.msra.mxu0 0.0
    %667 = vmatpush.xpose.msra.mxu0 0.0
    %668 = vmatpush.xpose.msra.mxu0 0.0
    %669 = vmatpush.xpose.msra.mxu0 0.0
    %670 = vmatpush.xpose.msra.mxu0 0.0
    %671 = vmatpush.xpose.msra.mxu0 0.0
    %672 = vmatpush.xpose.msra.mxu0 0.0
    %673 = vmatpush.xpose.msra.mxu0 0.0
    %674 = vmatpush.xpose.msra.mxu0 0.0
    %675 = vmatpush.xpose.msra.mxu0 %v658
    %676 = vmatmul.f32.gmra.mxu0 %v656
    %v677 = vpop.f32.mrf.mxu0
    %v678 = vadd.f32 %v127, %v677
    %679 = vdwg.mxu0
    %v680 = vsel %vm587, %v610, -inf
    %681 = vmax.xlane.f32.xlu0 %v680
    %v682 = vpop.xlane.xlu0 %681
    %v683 = vsel %vm587, %v678, -inf
    %684 = vmax.xlane.f32.xlu0 %v683
    %v685 = vpop.xlane.xlu0 %684
    %v686 = vsub.f32 %v610, %v682
    %v687 = vsub.f32 %v678, %v685
    %v688 = vmul.f32 %v686, 1.442695
    %v689 = vpow.pop %v688
    %v690 = vmul.f32 %v687, 1.442695
    %v691 = vpow.pop %v690
    %v692 = vsel %vm587, %v689, 0.0
    %693 = vadd.xlane.f32.xlu0 %v692
    %v694 = vpop.xlane.xlu0 %693
    %v695 = vsel %vm587, %v691, 0.0
    %696 = vadd.xlane.f32.xlu0 %v695
    %v697 = vpop.xlane.xlu0 %696
    %v698 = vrcp.pop %v694
    %v699 = vmul.f32 %v694, %v698
    %v700 = vsub.f32 1.0, %v699
    %v701 = vmul.f32 %v698, %v700
    %v702 = vadd.f32 %v698, %v701
    %vm703 = vweird.f32 %v694
    %vm704 = vweird.f32 %v698
    %vm705 = vmor %vm703, %vm704
    %v706 = vsel %vm705, %v698, %v702
    %v707 = vand.u32 2147483647, %v694
    %vm708 = vcmp.eq.f32.partialorder %v707, 8.507059e+37
    %v709 = vand.u32 %v694, 2147483648
    %v710 = vor.u32 1.1754944e-38, %v709
    %v711 = vsel %vm708, %v710, %v706
    %v712 = vrcp.pop %v697
    %v713 = vmul.f32 %v697, %v712
    %v714 = vsub.f32 1.0, %v713
    %v715 = vmul.f32 %v712, %v714
    %v716 = vadd.f32 %v712, %v715
    %vm717 = vweird.f32 %v697
    %vm718 = vweird.f32 %v712
    %vm719 = vmor %vm717, %vm718
    %v720 = vsel %vm719, %v712, %v716
    %v721 = vand.u32 2147483647, %v697
    %vm722 = vcmp.eq.f32.partialorder %v721, 8.507059e+37
    %v723 = vand.u32 %v697, 2147483648
    %v724 = vor.u32 1.1754944e-38, %v723
    %v725 = vsel %vm722, %v724, %v720
    %v726 = vmul.f32 %v689, %v711
    %v727 = vmul.f32 %v691, %v725
    %v736 = vrot.slane %v473, 7
    %v737 = vsel %vm545, %v736, %v455
    %v738 = vrot.slane %v459, 6
    %v739 = vsel %vm548, %v738, %v737
    %v740 = vrot.slane %v475, 5
    %v741 = vsel %vm551, %v740, %v739
    %v742 = vrot.slane %v467, 4
    %v743 = vsel %vm554, %v742, %v741
    %v744 = vrot.slane %v477, 3
    %v745 = vsel %vm557, %v744, %v743
    %v746 = vrot.slane %v471, 2
    %v747 = vsel %vm560, %v746, %v745
    %v748 = vrot.slane %v479, 1
    %v749 = vsel %vm563, %v748, %v747
    %v752 = vsel %vm587, %v726, 0
    %754 = vmatpush.msra.mxu0 0.0
    %755 = vmatpush.msra.mxu0 0.0
    %756 = vmatpush.msra.mxu0 0.0
    %757 = vmatpush.msra.mxu0 0.0
    %758 = vmatpush.msra.mxu0 0.0
    %759 = vmatpush.msra.mxu0 0.0
    %760 = vmatpush.msra.mxu0 0.0
    %761 = vmatpush.msra.mxu0 0.0
    %762 = vmatpush.msra.mxu0 0.0
    %763 = vmatpush.msra.mxu0 0.0
    %764 = vmatpush.msra.mxu0 0.0
    %765 = vmatpush.msra.mxu0 0.0
    %766 = vmatpush.msra.mxu0 0.0
    %767 = vmatpush.msra.mxu0 0.0
    %768 = vmatpush.msra.mxu0 0.0
    %769 = vmatpush.msra.mxu0 %v749
    %770 = vmatmul.f32.gmra.mxu0 %v752
    %v771 = vpop.f32.mrf.mxu0
    %v772 = vadd.f32 0.0, %v771
    %773 = vdwg.mxu0
    %v782 = vrot.slane %v529, 7
    %v783 = vsel %vm545, %v782, %v511
    %v784 = vrot.slane %v515, 6
    %v785 = vsel %vm548, %v784, %v783
    %v786 = vrot.slane %v531, 5
    %v787 = vsel %vm551, %v786, %v785
    %v788 = vrot.slane %v523, 4
    %v789 = vsel %vm554, %v788, %v787
    %v790 = vrot.slane %v533, 3
    %v791 = vsel %vm557, %v790, %v789
    %v792 = vrot.slane %v527, 2
    %v793 = vsel %vm560, %v792, %v791
    %v794 = vrot.slane %v535, 1
    %v795 = vsel %vm563, %v794, %v793
    %v798 = vsel %vm587, %v727, 0
    %800 = vmatpush.msra.mxu0 0.0
    %801 = vmatpush.msra.mxu0 0.0
    %802 = vmatpush.msra.mxu0 0.0
    %803 = vmatpush.msra.mxu0 0.0
    %804 = vmatpush.msra.mxu0 0.0
    %805 = vmatpush.msra.mxu0 0.0
    %806 = vmatpush.msra.mxu0 0.0
    %807 = vmatpush.msra.mxu0 0.0
    %808 = vmatpush.msra.mxu0 0.0
    %809 = vmatpush.msra.mxu0 0.0
    %810 = vmatpush.msra.mxu0 0.0
    %811 = vmatpush.msra.mxu0 0.0
    %812 = vmatpush.msra.mxu0 0.0
    %813 = vmatpush.msra.mxu0 0.0
    %814 = vmatpush.msra.mxu0 0.0
    %815 = vmatpush.msra.mxu0 %v795
    %816 = vmatmul.f32.gmra.mxu0 %v798
    %v817 = vpop.f32.mrf.mxu0
    %v818 = vadd.f32 0.0, %v817
    %819 = vdwg.mxu0
    %820 = vst.msk [vmem:[#allocation2] sm:$0xff] %vm587, %v772
    %821 = vst.msk [vmem:[#allocation2 + $0x8] sm:$0xff] %vm587, %v818
    %v822 = vrot.slane %v183, 1
    %v823 = vsel %vm545, %v201, %v822
    %v824 = vrot.slane %v187, 7
    %v825 = vsel %vm548, %v824, %v823
    %v826 = vrot.slane %v203, 6
    %v827 = vsel %vm551, %v826, %v825
    %v828 = vrot.slane %v195, 5
    %v829 = vsel %vm554, %v828, %v827
    %v830 = vrot.slane %v205, 4
    %v831 = vsel %vm557, %v830, %v829
    %v832 = vrot.slane %v199, 3
    %v833 = vsel %vm560, %v832, %v831
    %v834 = vrot.slane %v207, 2
    %v835 = vsel %vm563, %v834, %v833
    %v836 = vrot.slane %v319, 1
    %v837 = vsel %vm545, %v337, %v836
    %v838 = vrot.slane %v323, 7
    %v839 = vsel %vm548, %v838, %v837
    %v840 = vrot.slane %v339, 6
    %v841 = vsel %vm551, %v840, %v839
    %v842 = vrot.slane %v331, 5
    %v843 = vsel %vm554, %v842, %v841
    %v844 = vrot.slane %v341, 4
    %v845 = vsel %vm557, %v844, %v843
    %v846 = vrot.slane %v335, 3
    %v847 = vsel %vm560, %v846, %v845
    %v848 = vrot.slane %v343, 2
    %v849 = vsel %vm563, %v848, %v847
    %v850 = vsel %vm587, %v835, 0
    %v852 = vsel %vm587, %v849, 0
    %854 = vmatpush.xpose.msra.mxu0 0.0
    %855 = vmatpush.xpose.msra.mxu0 0.0
    %856 = vmatpush.xpose.msra.mxu0 0.0
    %857 = vmatpush.xpose.msra.mxu0 0.0
    %858 = vmatpush.xpose.msra.mxu0 0.0
    %859 = vmatpush.xpose.msra.mxu0 0.0
    %860 = vmatpush.xpose.msra.mxu0 0.0
    %861 = vmatpush.xpose.msra.mxu0 0.0
    %862 = vmatpush.xpose.msra.mxu0 0.0
    %863 = vmatpush.xpose.msra.mxu0 0.0
    %864 = vmatpush.xpose.msra.mxu0 0.0
    %865 = vmatpush.xpose.msra.mxu0 0.0
    %866 = vmatpush.xpose.msra.mxu0 0.0
    %867 = vmatpush.xpose.msra.mxu0 0.0
    %868 = vmatpush.xpose.msra.mxu0 0.0
    %869 = vmatpush.xpose.msra.mxu0 %v852
    %870 = vmatmul.f32.gmra.mxu0 %v850
    %v871 = vpop.f32.mrf.mxu0
    %v872 = vadd.f32 %v128, %v871
    %873 = vdwg.mxu0
    %v874 = vrot.slane %v239, 1
    %v875 = vsel %vm545, %v257, %v874
    %v876 = vrot.slane %v243, 7
    %v877 = vsel %vm548, %v876, %v875
    %v878 = vrot.slane %v259, 6
    %v879 = vsel %vm551, %v878, %v877
    %v880 = vrot.slane %v251, 5
    %v881 = vsel %vm554, %v880, %v879
    %v882 = vrot.slane %v261, 4
    %v883 = vsel %vm557, %v882, %v881
    %v884 = vrot.slane %v255, 3
    %v885 = vsel %vm560, %v884, %v883
    %v886 = vrot.slane %v263, 2
    %v887 = vsel %vm563, %v886, %v885
    %v888 = vrot.slane %v375, 1
    %v889 = vsel %vm545, %v393, %v888
    %v890 = vrot.slane %v379, 7
    %v891 = vsel %vm548, %v890, %v889
    %v892 = vrot.slane %v395, 6
    %v893 = vsel %vm551, %v892, %v891
    %v894 = vrot.slane %v387, 5
    %v895 = vsel %vm554, %v894, %v893
    %v896 = vrot.slane %v397, 4
    %v897 = vsel %vm557, %v896, %v895
    %v898 = vrot.slane %v391, 3
    %v899 = vsel %vm560, %v898, %v897
    %v900 = vrot.slane %v399, 2
    %v901 = vsel %vm563, %v900, %v899
    %v902 = vsel %vm587, %v887, 0
    %v904 = vsel %vm587, %v901, 0
    %906 = vmatpush.xpose.msra.mxu0 0.0
    %907 = vmatpush.xpose.msra.mxu0 0.0
    %908 = vmatpush.xpose.msra.mxu0 0.0
    %909 = vmatpush.xpose.msra.mxu0 0.0
    %910 = vmatpush.xpose.msra.mxu0 0.0
    %911 = vmatpush.xpose.msra.mxu0 0.0
    %912 = vmatpush.xpose.msra.mxu0 0.0
    %913 = vmatpush.xpose.msra.mxu0 0.0
    %914 = vmatpush.xpose.msra.mxu0 0.0
    %915 = vmatpush.xpose.msra.mxu0 0.0
    %916 = vmatpush.xpose.msra.mxu0 0.0
    %917 = vmatpush.xpose.msra.mxu0 0.0
    %918 = vmatpush.xpose.msra.mxu0 0.0
    %919 = vmatpush.xpose.msra.mxu0 0.0
    %920 = vmatpush.xpose.msra.mxu0 0.0
    %921 = vmatpush.xpose.msra.mxu0 %v904
    %922 = vmatmul.f32.gmra.mxu0 %v902
    %v923 = vpop.f32.mrf.mxu0
    %v924 = vadd.f32 %v128, %v923
    %925 = vdwg.mxu0
    %v926 = vsel %vm587, %v872, -inf
    %927 = vmax.xlane.f32.xlu0 %v926
    %v928 = vpop.xlane.xlu0 %927
    %v929 = vsel %vm587, %v924, -inf
    %930 = vmax.xlane.f32.xlu0 %v929
    %v931 = vpop.xlane.xlu0 %930
    %v932 = vsub.f32 %v872, %v928
    %v933 = vsub.f32 %v924, %v931
    %v934 = vmul.f32 %v932, 1.442695
    %v935 = vpow.pop %v934
    %v936 = vmul.f32 %v933, 1.442695
    %v937 = vpow.pop %v936
    %v938 = vsel %vm587, %v935, 0.0
    %939 = vadd.xlane.f32.xlu0 %v938
    %v940 = vpop.xlane.xlu0 %939
    %v941 = vsel %vm587, %v937, 0.0
    %942 = vadd.xlane.f32.xlu0 %v941
    %v943 = vpop.xlane.xlu0 %942
    %v944 = vrcp.pop %v940
    %v945 = vmul.f32 %v940, %v944
    %v946 = vsub.f32 1.0, %v945
    %v947 = vmul.f32 %v944, %v946
    %v948 = vadd.f32 %v944, %v947
    %vm949 = vweird.f32 %v940
    %vm950 = vweird.f32 %v944
    %vm951 = vmor %vm949, %vm950
    %v952 = vsel %vm951, %v944, %v948
    %v953 = vand.u32 2147483647, %v940
    %vm954 = vcmp.eq.f32.partialorder %v953, 8.507059e+37
    %v955 = vand.u32 %v940, 2147483648
    %v956 = vor.u32 1.1754944e-38, %v955
    %v957 = vsel %vm954, %v956, %v952
    %v958 = vrcp.pop %v943
    %v959 = vmul.f32 %v943, %v958
    %v960 = vsub.f32 1.0, %v959
    %v961 = vmul.f32 %v958, %v960
    %v962 = vadd.f32 %v958, %v961
    %vm963 = vweird.f32 %v943
    %vm964 = vweird.f32 %v958
    %vm965 = vmor %vm963, %vm964
    %v966 = vsel %vm965, %v958, %v962
    %v967 = vand.u32 2147483647, %v943
    %vm968 = vcmp.eq.f32.partialorder %v967, 8.507059e+37
    %v969 = vand.u32 %v943, 2147483648
    %v970 = vor.u32 1.1754944e-38, %v969
    %v971 = vsel %vm968, %v970, %v966
    %v972 = vmul.f32 %v935, %v957
    %v973 = vmul.f32 %v937, %v971
    %v974 = vrot.slane %v455, 1
    %v975 = vsel %vm545, %v473, %v974
    %v976 = vrot.slane %v459, 7
    %v977 = vsel %vm548, %v976, %v975
    %v978 = vrot.slane %v475, 6
    %v979 = vsel %vm551, %v978, %v977
    %v980 = vrot.slane %v467, 5
    %v981 = vsel %vm554, %v980, %v979
    %v982 = vrot.slane %v477, 4
    %v983 = vsel %vm557, %v982, %v981
    %v984 = vrot.slane %v471, 3
    %v985 = vsel %vm560, %v984, %v983
    %v986 = vrot.slane %v479, 2
    %v987 = vsel %vm563, %v986, %v985
    %v990 = vsel %vm587, %v972, 0
    %992 = vmatpush.msra.mxu0 0.0
    %993 = vmatpush.msra.mxu0 0.0
    %994 = vmatpush.msra.mxu0 0.0
    %995 = vmatpush.msra.mxu0 0.0
    %996 = vmatpush.msra.mxu0 0.0
    %997 = vmatpush.msra.mxu0 0.0
    %998 = vmatpush.msra.mxu0 0.0
    %999 = vmatpush.msra.mxu0 0.0
    %1000 = vmatpush.msra.mxu0 0.0
    %1001 = vmatpush.msra.mxu0 0.0
    %1002 = vmatpush.msra.mxu0 0.0
    %1003 = vmatpush.msra.mxu0 0.0
    %1004 = vmatpush.msra.mxu0 0.0
    %1005 = vmatpush.msra.mxu0 0.0
    %1006 = vmatpush.msra.mxu0 0.0
    %1007 = vmatpush.msra.mxu0 %v987
    %1008 = vmatmul.f32.gmra.mxu0 %v990
    %v1009 = vpop.f32.mrf.mxu0
    %v1010 = vadd.f32 0.0, %v1009
    %1011 = vdwg.mxu0
    %v1012 = vrot.slane %v511, 1
    %v1013 = vsel %vm545, %v529, %v1012
    %v1014 = vrot.slane %v515, 7
    %v1015 = vsel %vm548, %v1014, %v1013
    %v1016 = vrot.slane %v531, 6
    %v1017 = vsel %vm551, %v1016, %v1015
    %v1018 = vrot.slane %v523, 5
    %v1019 = vsel %vm554, %v1018, %v1017
    %v1020 = vrot.slane %v533, 4
    %v1021 = vsel %vm557, %v1020, %v1019
    %v1022 = vrot.slane %v527, 3
    %v1023 = vsel %vm560, %v1022, %v1021
    %v1024 = vrot.slane %v535, 2
    %v1025 = vsel %vm563, %v1024, %v1023
    %v1028 = vsel %vm587, %v973, 0
    %1030 = vmatpush.msra.mxu0 0.0
    %1031 = vmatpush.msra.mxu0 0.0
    %1032 = vmatpush.msra.mxu0 0.0
    %1033 = vmatpush.msra.mxu0 0.0
    %1034 = vmatpush.msra.mxu0 0.0
    %1035 = vmatpush.msra.mxu0 0.0
    %1036 = vmatpush.msra.mxu0 0.0
    %1037 = vmatpush.msra.mxu0 0.0
    %1038 = vmatpush.msra.mxu0 0.0
    %1039 = vmatpush.msra.mxu0 0.0
    %1040 = vmatpush.msra.mxu0 0.0
    %1041 = vmatpush.msra.mxu0 0.0
    %1042 = vmatpush.msra.mxu0 0.0
    %1043 = vmatpush.msra.mxu0 0.0
    %1044 = vmatpush.msra.mxu0 0.0
    %1045 = vmatpush.msra.mxu0 %v1025
    %1046 = vmatmul.f32.gmra.mxu0 %v1028
    %v1047 = vpop.f32.mrf.mxu0
    %v1048 = vadd.f32 0.0, %v1047
    %1049 = vdwg.mxu0
    %1052 = vrot.lane.b32.xlu0 %v1010, 8
    %v1053 = vpop.permute.xlu0 %1052
    %1054 = vrot.lane.b32.xlu0 %v1048, 8
    %v1055 = vpop.permute.xlu0 %1054
    %vm1058 = vcmask 130112
    %1059 = vst.msk [vmem:[#allocation2] sm:$0xff] %vm1058, %v1053
    %1060 = vst.msk [vmem:[#allocation2 + $0x8] sm:$0xff] %vm1058, %v1055
    %v1061 = vrot.slane %v183, 2
    %v1062 = vrot.slane %v201, 1
    %v1063 = vsel %vm545, %v1062, %v1061
    %v1064 = vsel %vm548, %v187, %v1063
    %v1065 = vrot.slane %v203, 7
    %v1066 = vsel %vm551, %v1065, %v1064
    %v1067 = vrot.slane %v195, 6
    %v1068 = vsel %vm554, %v1067, %v1066
    %v1069 = vrot.slane %v205, 5
    %v1070 = vsel %vm557, %v1069, %v1068
    %v1071 = vrot.slane %v199, 4
    %v1072 = vsel %vm560, %v1071, %v1070
    %v1073 = vrot.slane %v207, 3
    %v1074 = vsel %vm563, %v1073, %v1072
    %v1075 = vrot.slane %v319, 2
    %v1076 = vrot.slane %v337, 1
    %v1077 = vsel %vm545, %v1076, %v1075
    %v1078 = vsel %vm548, %v323, %v1077
    %v1079 = vrot.slane %v339, 7
    %v1080 = vsel %vm551, %v1079, %v1078
    %v1081 = vrot.slane %v331, 6
    %v1082 = vsel %vm554, %v1081, %v1080
    %v1083 = vrot.slane %v341, 5
    %v1084 = vsel %vm557, %v1083, %v1082
    %v1085 = vrot.slane %v335, 4
    %v1086 = vsel %vm560, %v1085, %v1084
    %v1087 = vrot.slane %v343, 3
    %v1088 = vsel %vm563, %v1087, %v1086
    %v1089 = vsel %vm587, %v1074, 0
    %v1091 = vsel %vm587, %v1088, 0
    %1093 = vmatpush.xpose.msra.mxu0 0.0
    %1094 = vmatpush.xpose.msra.mxu0 0.0
    %1095 = vmatpush.xpose.msra.mxu0 0.0
    %1096 = vmatpush.xpose.msra.mxu0 0.0
    %1097 = vmatpush.xpose.msra.mxu0 0.0
    %1098 = vmatpush.xpose.msra.mxu0 0.0
    %1099 = vmatpush.xpose.msra.mxu0 0.0
    %1100 = vmatpush.xpose.msra.mxu0 0.0
    %1101 = vmatpush.xpose.msra.mxu0 0.0
    %1102 = vmatpush.xpose.msra.mxu0 0.0
    %1103 = vmatpush.xpose.msra.mxu0 0.0
    %1104 = vmatpush.xpose.msra.mxu0 0.0
    %1105 = vmatpush.xpose.msra.mxu0 0.0
    %1106 = vmatpush.xpose.msra.mxu0 0.0
    %1107 = vmatpush.xpose.msra.mxu0 0.0
    %1108 = vmatpush.xpose.msra.mxu0 %v1091
    %1109 = vmatmul.f32.gmra.mxu0 %v1089
    %v1110 = vpop.f32.mrf.mxu0
    %v1111 = vadd.f32 %v129, %v1110
    %1112 = vdwg.mxu0
    %v1113 = vrot.slane %v239, 2
    %v1114 = vrot.slane %v257, 1
    %v1115 = vsel %vm545, %v1114, %v1113
    %v1116 = vsel %vm548, %v243, %v1115
    %v1117 = vrot.slane %v259, 7
    %v1118 = vsel %vm551, %v1117, %v1116
    %v1119 = vrot.slane %v251, 6
    %v1120 = vsel %vm554, %v1119, %v1118
    %v1121 = vrot.slane %v261, 5
    %v1122 = vsel %vm557, %v1121, %v1120
    %v1123 = vrot.slane %v255, 4
    %v1124 = vsel %vm560, %v1123, %v1122
    %v1125 = vrot.slane %v263, 3
    %v1126 = vsel %vm563, %v1125, %v1124
    %v1127 = vrot.slane %v375, 2
    %v1128 = vrot.slane %v393, 1
    %v1129 = vsel %vm545, %v1128, %v1127
    %v1130 = vsel %vm548, %v379, %v1129
    %v1131 = vrot.slane %v395, 7
    %v1132 = vsel %vm551, %v1131, %v1130
    %v1133 = vrot.slane %v387, 6
    %v1134 = vsel %vm554, %v1133, %v1132
    %v1135 = vrot.slane %v397, 5
    %v1136 = vsel %vm557, %v1135, %v1134
    %v1137 = vrot.slane %v391, 4
    %v1138 = vsel %vm560, %v1137, %v1136
    %v1139 = vrot.slane %v399, 3
    %v1140 = vsel %vm563, %v1139, %v1138
    %v1141 = vsel %vm587, %v1126, 0
    %v1143 = vsel %vm587, %v1140, 0
    %1145 = vmatpush.xpose.msra.mxu0 0.0
    %1146 = vmatpush.xpose.msra.mxu0 0.0
    %1147 = vmatpush.xpose.msra.mxu0 0.0
    %1148 = vmatpush.xpose.msra.mxu0 0.0
    %1149 = vmatpush.xpose.msra.mxu0 0.0
    %1150 = vmatpush.xpose.msra.mxu0 0.0
    %1151 = vmatpush.xpose.msra.mxu0 0.0
    %1152 = vmatpush.xpose.msra.mxu0 0.0
    %1153 = vmatpush.xpose.msra.mxu0 0.0
    %1154 = vmatpush.xpose.msra.mxu0 0.0
    %1155 = vmatpush.xpose.msra.mxu0 0.0
    %1156 = vmatpush.xpose.msra.mxu0 0.0
    %1157 = vmatpush.xpose.msra.mxu0 0.0
    %1158 = vmatpush.xpose.msra.mxu0 0.0
    %1159 = vmatpush.xpose.msra.mxu0 0.0
    %1160 = vmatpush.xpose.msra.mxu0 %v1143
    %1161 = vmatmul.f32.gmra.mxu0 %v1141
    %v1162 = vpop.f32.mrf.mxu0
    %v1163 = vadd.f32 %v129, %v1162
    %1164 = vdwg.mxu0
    %v1165 = vsel %vm587, %v1111, -inf
    %1166 = vmax.xlane.f32.xlu0 %v1165
    %v1167 = vpop.xlane.xlu0 %1166
    %v1168 = vsel %vm587, %v1163, -inf
    %1169 = vmax.xlane.f32.xlu0 %v1168
    %v1170 = vpop.xlane.xlu0 %1169
    %v1171 = vsub.f32 %v1111, %v1167
    %v1172 = vsub.f32 %v1163, %v1170
    %v1173 = vmul.f32 %v1171, 1.442695
    %v1174 = vpow.pop %v1173
    %v1175 = vmul.f32 %v1172, 1.442695
    %v1176 = vpow.pop %v1175
    %v1177 = vsel %vm587, %v1174, 0.0
    %1178 = vadd.xlane.f32.xlu0 %v1177
    %v1179 = vpop.xlane.xlu0 %1178
    %v1180 = vsel %vm587, %v1176, 0.0
    %1181 = vadd.xlane.f32.xlu0 %v1180
    %v1182 = vpop.xlane.xlu0 %1181
    %v1183 = vrcp.pop %v1179
    %v1184 = vmul.f32 %v1179, %v1183
    %v1185 = vsub.f32 1.0, %v1184
    %v1186 = vmul.f32 %v1183, %v1185
    %v1187 = vadd.f32 %v1183, %v1186
    %vm1188 = vweird.f32 %v1179
    %vm1189 = vweird.f32 %v1183
    %vm1190 = vmor %vm1188, %vm1189
    %v1191 = vsel %vm1190, %v1183, %v1187
    %v1192 = vand.u32 2147483647, %v1179
    %vm1193 = vcmp.eq.f32.partialorder %v1192, 8.507059e+37
    %v1194 = vand.u32 %v1179, 2147483648
    %v1195 = vor.u32 1.1754944e-38, %v1194
    %v1196 = vsel %vm1193, %v1195, %v1191
    %v1197 = vrcp.pop %v1182
    %v1198 = vmul.f32 %v1182, %v1197
    %v1199 = vsub.f32 1.0, %v1198
    %v1200 = vmul.f32 %v1197, %v1199
    %v1201 = vadd.f32 %v1197, %v1200
    %vm1202 = vweird.f32 %v1182
    %vm1203 = vweird.f32 %v1197
    %vm1204 = vmor %vm1202, %vm1203
    %v1205 = vsel %vm1204, %v1197, %v1201
    %v1206 = vand.u32 2147483647, %v1182
    %vm1207 = vcmp.eq.f32.partialorder %v1206, 8.507059e+37
    %v1208 = vand.u32 %v1182, 2147483648
    %v1209 = vor.u32 1.1754944e-38, %v1208
    %v1210 = vsel %vm1207, %v1209, %v1205
    %v1211 = vmul.f32 %v1174, %v1196
    %v1212 = vmul.f32 %v1176, %v1210
    %v1213 = vrot.slane %v455, 2
    %v1214 = vrot.slane %v473, 1
    %v1215 = vsel %vm545, %v1214, %v1213
    %v1216 = vsel %vm548, %v459, %v1215
    %v1217 = vrot.slane %v475, 7
    %v1218 = vsel %vm551, %v1217, %v1216
    %v1219 = vrot.slane %v467, 6
    %v1220 = vsel %vm554, %v1219, %v1218
    %v1221 = vrot.slane %v477, 5
    %v1222 = vsel %vm557, %v1221, %v1220
    %v1223 = vrot.slane %v471, 4
    %v1224 = vsel %vm560, %v1223, %v1222
    %v1225 = vrot.slane %v479, 3
    %v1226 = vsel %vm563, %v1225, %v1224
    %v1229 = vsel %vm587, %v1211, 0
    %1231 = vmatpush.msra.mxu0 0.0
    %1232 = vmatpush.msra.mxu0 0.0
    %1233 = vmatpush.msra.mxu0 0.0
    %1234 = vmatpush.msra.mxu0 0.0
    %1235 = vmatpush.msra.mxu0 0.0
    %1236 = vmatpush.msra.mxu0 0.0
    %1237 = vmatpush.msra.mxu0 0.0
    %1238 = vmatpush.msra.mxu0 0.0
    %1239 = vmatpush.msra.mxu0 0.0
    %1240 = vmatpush.msra.mxu0 0.0
    %1241 = vmatpush.msra.mxu0 0.0
    %1242 = vmatpush.msra.mxu0 0.0
    %1243 = vmatpush.msra.mxu0 0.0
    %1244 = vmatpush.msra.mxu0 0.0
    %1245 = vmatpush.msra.mxu0 0.0
    %1246 = vmatpush.msra.mxu0 %v1226
    %1247 = vmatmul.f32.gmra.mxu0 %v1229
    %v1248 = vpop.f32.mrf.mxu0
    %v1249 = vadd.f32 0.0, %v1248
    %1250 = vdwg.mxu0
    %v1251 = vrot.slane %v511, 2
    %v1252 = vrot.slane %v529, 1
    %v1253 = vsel %vm545, %v1252, %v1251
    %v1254 = vsel %vm548, %v515, %v1253
    %v1255 = vrot.slane %v531, 7
    %v1256 = vsel %vm551, %v1255, %v1254
    %v1257 = vrot.slane %v523, 6
    %v1258 = vsel %vm554, %v1257, %v1256
    %v1259 = vrot.slane %v533, 5
    %v1260 = vsel %vm557, %v1259, %v1258
    %v1261 = vrot.slane %v527, 4
    %v1262 = vsel %vm560, %v1261, %v1260
    %v1263 = vrot.slane %v535, 3
    %v1264 = vsel %vm563, %v1263, %v1262
    %v1267 = vsel %vm587, %v1212, 0
    %1269 = vmatpush.msra.mxu0 0.0
    %1270 = vmatpush.msra.mxu0 0.0
    %1271 = vmatpush.msra.mxu0 0.0
    %1272 = vmatpush.msra.mxu0 0.0
    %1273 = vmatpush.msra.mxu0 0.0
    %1274 = vmatpush.msra.mxu0 0.0
    %1275 = vmatpush.msra.mxu0 0.0
    %1276 = vmatpush.msra.mxu0 0.0
    %1277 = vmatpush.msra.mxu0 0.0
    %1278 = vmatpush.msra.mxu0 0.0
    %1279 = vmatpush.msra.mxu0 0.0
    %1280 = vmatpush.msra.mxu0 0.0
    %1281 = vmatpush.msra.mxu0 0.0
    %1282 = vmatpush.msra.mxu0 0.0
    %1283 = vmatpush.msra.mxu0 0.0
    %1284 = vmatpush.msra.mxu0 %v1264
    %1285 = vmatmul.f32.gmra.mxu0 %v1267
    %v1286 = vpop.f32.mrf.mxu0
    %v1287 = vadd.f32 0.0, %v1286
    %1288 = vdwg.mxu0
    %1291 = vrot.lane.b32.xlu0 %v1249, 16
    %v1292 = vpop.permute.xlu0 %1291
    %1293 = vrot.lane.b32.xlu0 %v1287, 16
    %v1294 = vpop.permute.xlu0 %1293
    %vm1297 = vcmask 195712
    %1298 = vst.msk [vmem:[#allocation2] sm:$0xff] %vm1297, %v1292
    %1299 = vst.msk [vmem:[#allocation2 + $0x8] sm:$0xff] %vm1297, %v1294
    %v1300 = vrot.slane %v183, 3
    %v1301 = vrot.slane %v201, 2
    %v1302 = vsel %vm545, %v1301, %v1300
    %v1303 = vrot.slane %v187, 1
    %v1304 = vsel %vm548, %v1303, %v1302
    %v1305 = vsel %vm551, %v203, %v1304
    %v1306 = vrot.slane %v195, 7
    %v1307 = vsel %vm554, %v1306, %v1305
    %v1308 = vrot.slane %v205, 6
    %v1309 = vsel %vm557, %v1308, %v1307
    %v1310 = vrot.slane %v199, 5
    %v1311 = vsel %vm560, %v1310, %v1309
    %v1312 = vrot.slane %v207, 4
    %v1313 = vsel %vm563, %v1312, %v1311
    %v1314 = vrot.slane %v319, 3
    %v1315 = vrot.slane %v337, 2
    %v1316 = vsel %vm545, %v1315, %v1314
    %v1317 = vrot.slane %v323, 1
    %v1318 = vsel %vm548, %v1317, %v1316
    %v1319 = vsel %vm551, %v339, %v1318
    %v1320 = vrot.slane %v331, 7
    %v1321 = vsel %vm554, %v1320, %v1319
    %v1322 = vrot.slane %v341, 6
    %v1323 = vsel %vm557, %v1322, %v1321
    %v1324 = vrot.slane %v335, 5
    %v1325 = vsel %vm560, %v1324, %v1323
    %v1326 = vrot.slane %v343, 4
    %v1327 = vsel %vm563, %v1326, %v1325
    %v1328 = vsel %vm587, %v1313, 0
    %v1330 = vsel %vm587, %v1327, 0
    %1332 = vmatpush.xpose.msra.mxu0 0.0
    %1333 = vmatpush.xpose.msra.mxu0 0.0
    %1334 = vmatpush.xpose.msra.mxu0 0.0
    %1335 = vmatpush.xpose.msra.mxu0 0.0
    %1336 = vmatpush.xpose.msra.mxu0 0.0
    %1337 = vmatpush.xpose.msra.mxu0 0.0
    %1338 = vmatpush.xpose.msra.mxu0 0.0
    %1339 = vmatpush.xpose.msra.mxu0 0.0
    %1340 = vmatpush.xpose.msra.mxu0 0.0
    %1341 = vmatpush.xpose.msra.mxu0 0.0
    %1342 = vmatpush.xpose.msra.mxu0 0.0
    %1343 = vmatpush.xpose.msra.mxu0 0.0
    %1344 = vmatpush.xpose.msra.mxu0 0.0
    %1345 = vmatpush.xpose.msra.mxu0 0.0
    %1346 = vmatpush.xpose.msra.mxu0 0.0
    %1347 = vmatpush.xpose.msra.mxu0 %v1330
    %1348 = vmatmul.f32.gmra.mxu0 %v1328
    %v1349 = vpop.f32.mrf.mxu0
    %v1350 = vadd.f32 %v130, %v1349
    %1351 = vdwg.mxu0
    %v1352 = vrot.slane %v239, 3
    %v1353 = vrot.slane %v257, 2
    %v1354 = vsel %vm545, %v1353, %v1352
    %v1355 = vrot.slane %v243, 1
    %v1356 = vsel %vm548, %v1355, %v1354
    %v1357 = vsel %vm551, %v259, %v1356
    %v1358 = vrot.slane %v251, 7
    %v1359 = vsel %vm554, %v1358, %v1357
    %v1360 = vrot.slane %v261, 6
    %v1361 = vsel %vm557, %v1360, %v1359
    %v1362 = vrot.slane %v255, 5
    %v1363 = vsel %vm560, %v1362, %v1361
    %v1364 = vrot.slane %v263, 4
    %v1365 = vsel %vm563, %v1364, %v1363
    %v1366 = vrot.slane %v375, 3
    %v1367 = vrot.slane %v393, 2
    %v1368 = vsel %vm545, %v1367, %v1366
    %v1369 = vrot.slane %v379, 1
    %v1370 = vsel %vm548, %v1369, %v1368
    %v1371 = vsel %vm551, %v395, %v1370
    %v1372 = vrot.slane %v387, 7
    %v1373 = vsel %vm554, %v1372, %v1371
    %v1374 = vrot.slane %v397, 6
    %v1375 = vsel %vm557, %v1374, %v1373
    %v1376 = vrot.slane %v391, 5
    %v1377 = vsel %vm560, %v1376, %v1375
    %v1378 = vrot.slane %v399, 4
    %v1379 = vsel %vm563, %v1378, %v1377
    %v1380 = vsel %vm587, %v1365, 0
    %v1382 = vsel %vm587, %v1379, 0
    %1384 = vmatpush.xpose.msra.mxu0 0.0
    %1385 = vmatpush.xpose.msra.mxu0 0.0
    %1386 = vmatpush.xpose.msra.mxu0 0.0
    %1387 = vmatpush.xpose.msra.mxu0 0.0
    %1388 = vmatpush.xpose.msra.mxu0 0.0
    %1389 = vmatpush.xpose.msra.mxu0 0.0
    %1390 = vmatpush.xpose.msra.mxu0 0.0
    %1391 = vmatpush.xpose.msra.mxu0 0.0
    %1392 = vmatpush.xpose.msra.mxu0 0.0
    %1393 = vmatpush.xpose.msra.mxu0 0.0
    %1394 = vmatpush.xpose.msra.mxu0 0.0
    %1395 = vmatpush.xpose.msra.mxu0 0.0
    %1396 = vmatpush.xpose.msra.mxu0 0.0
    %1397 = vmatpush.xpose.msra.mxu0 0.0
    %1398 = vmatpush.xpose.msra.mxu0 0.0
    %1399 = vmatpush.xpose.msra.mxu0 %v1382
    %1400 = vmatmul.f32.gmra.mxu0 %v1380
    %v1401 = vpop.f32.mrf.mxu0
    %v1402 = vadd.f32 %v130, %v1401
    %1403 = vdwg.mxu0
    %v1404 = vsel %vm587, %v1350, -inf
    %1405 = vmax.xlane.f32.xlu0 %v1404
    %v1406 = vpop.xlane.xlu0 %1405
    %v1407 = vsel %vm587, %v1402, -inf
    %1408 = vmax.xlane.f32.xlu0 %v1407
    %v1409 = vpop.xlane.xlu0 %1408
    %v1410 = vsub.f32 %v1350, %v1406
    %v1411 = vsub.f32 %v1402, %v1409
    %v1412 = vmul.f32 %v1410, 1.442695
    %v1413 = vpow.pop %v1412
    %v1414 = vmul.f32 %v1411, 1.442695
    %v1415 = vpow.pop %v1414
    %v1416 = vsel %vm587, %v1413, 0.0
    %1417 = vadd.xlane.f32.xlu0 %v1416
    %v1418 = vpop.xlane.xlu0 %1417
    %v1419 = vsel %vm587, %v1415, 0.0
    %1420 = vadd.xlane.f32.xlu0 %v1419
    %v1421 = vpop.xlane.xlu0 %1420
    %v1422 = vrcp.pop %v1418
    %v1423 = vmul.f32 %v1418, %v1422
    %v1424 = vsub.f32 1.0, %v1423
    %v1425 = vmul.f32 %v1422, %v1424
    %v1426 = vadd.f32 %v1422, %v1425
    %vm1427 = vweird.f32 %v1418
    %vm1428 = vweird.f32 %v1422
    %vm1429 = vmor %vm1427, %vm1428
    %v1430 = vsel %vm1429, %v1422, %v1426
    %v1431 = vand.u32 2147483647, %v1418
    %vm1432 = vcmp.eq.f32.partialorder %v1431, 8.507059e+37
    %v1433 = vand.u32 %v1418, 2147483648
    %v1434 = vor.u32 1.1754944e-38, %v1433
    %v1435 = vsel %vm1432, %v1434, %v1430
    %v1436 = vrcp.pop %v1421
    %v1437 = vmul.f32 %v1421, %v1436
    %v1438 = vsub.f32 1.0, %v1437
    %v1439 = vmul.f32 %v1436, %v1438
    %v1440 = vadd.f32 %v1436, %v1439
    %vm1441 = vweird.f32 %v1421
    %vm1442 = vweird.f32 %v1436
    %vm1443 = vmor %vm1441, %vm1442
    %v1444 = vsel %vm1443, %v1436, %v1440
    %v1445 = vand.u32 2147483647, %v1421
    %vm1446 = vcmp.eq.f32.partialorder %v1445, 8.507059e+37
    %v1447 = vand.u32 %v1421, 2147483648
    %v1448 = vor.u32 1.1754944e-38, %v1447
    %v1449 = vsel %vm1446, %v1448, %v1444
    %v1450 = vmul.f32 %v1413, %v1435
    %v1451 = vmul.f32 %v1415, %v1449
    %v1452 = vrot.slane %v455, 3
    %v1453 = vrot.slane %v473, 2
    %v1454 = vsel %vm545, %v1453, %v1452
    %v1455 = vrot.slane %v459, 1
    %v1456 = vsel %vm548, %v1455, %v1454
    %v1457 = vsel %vm551, %v475, %v1456
    %v1458 = vrot.slane %v467, 7
    %v1459 = vsel %vm554, %v1458, %v1457
    %v1460 = vrot.slane %v477, 6
    %v1461 = vsel %vm557, %v1460, %v1459
    %v1462 = vrot.slane %v471, 5
    %v1463 = vsel %vm560, %v1462, %v1461
    %v1464 = vrot.slane %v479, 4
    %v1465 = vsel %vm563, %v1464, %v1463
    %v1468 = vsel %vm587, %v1450, 0
    %1470 = vmatpush.msra.mxu0 0.0
    %1471 = vmatpush.msra.mxu0 0.0
    %1472 = vmatpush.msra.mxu0 0.0
    %1473 = vmatpush.msra.mxu0 0.0
    %1474 = vmatpush.msra.mxu0 0.0
    %1475 = vmatpush.msra.mxu0 0.0
    %1476 = vmatpush.msra.mxu0 0.0
    %1477 = vmatpush.msra.mxu0 0.0
    %1478 = vmatpush.msra.mxu0 0.0
    %1479 = vmatpush.msra.mxu0 0.0
    %1480 = vmatpush.msra.mxu0 0.0
    %1481 = vmatpush.msra.mxu0 0.0
    %1482 = vmatpush.msra.mxu0 0.0
    %1483 = vmatpush.msra.mxu0 0.0
    %1484 = vmatpush.msra.mxu0 0.0
    %1485 = vmatpush.msra.mxu0 %v1465
    %1486 = vmatmul.f32.gmra.mxu0 %v1468
    %v1487 = vpop.f32.mrf.mxu0
    %v1488 = vadd.f32 0.0, %v1487
    %1489 = vdwg.mxu0
    %v1490 = vrot.slane %v511, 3
    %v1491 = vrot.slane %v529, 2
    %v1492 = vsel %vm545, %v1491, %v1490
    %v1493 = vrot.slane %v515, 1
    %v1494 = vsel %vm548, %v1493, %v1492
    %v1495 = vsel %vm551, %v531, %v1494
    %v1496 = vrot.slane %v523, 7
    %v1497 = vsel %vm554, %v1496, %v1495
    %v1498 = vrot.slane %v533, 6
    %v1499 = vsel %vm557, %v1498, %v1497
    %v1500 = vrot.slane %v527, 5
    %v1501 = vsel %vm560, %v1500, %v1499
    %v1502 = vrot.slane %v535, 4
    %v1503 = vsel %vm563, %v1502, %v1501
    %v1506 = vsel %vm587, %v1451, 0
    %1508 = vmatpush.msra.mxu0 0.0
    %1509 = vmatpush.msra.mxu0 0.0
    %1510 = vmatpush.msra.mxu0 0.0
    %1511 = vmatpush.msra.mxu0 0.0
    %1512 = vmatpush.msra.mxu0 0.0
    %1513 = vmatpush.msra.mxu0 0.0
    %1514 = vmatpush.msra.mxu0 0.0
    %1515 = vmatpush.msra.mxu0 0.0
    %1516 = vmatpush.msra.mxu0 0.0
    %1517 = vmatpush.msra.mxu0 0.0
    %1518 = vmatpush.msra.mxu0 0.0
    %1519 = vmatpush.msra.mxu0 0.0
    %1520 = vmatpush.msra.mxu0 0.0
    %1521 = vmatpush.msra.mxu0 0.0
    %1522 = vmatpush.msra.mxu0 0.0
    %1523 = vmatpush.msra.mxu0 %v1503
    %1524 = vmatmul.f32.gmra.mxu0 %v1506
    %v1525 = vpop.f32.mrf.mxu0
    %v1526 = vadd.f32 0.0, %v1525
    %1527 = vdwg.mxu0
    %1530 = vrot.lane.b32.xlu0 %v1488, 24
    %v1531 = vpop.permute.xlu0 %1530
    %1532 = vrot.lane.b32.xlu0 %v1526, 24
    %v1533 = vpop.permute.xlu0 %1532
    %vm1536 = vcmask 261312
    %1537 = vst.msk [vmem:[#allocation2] sm:$0xff] %vm1536, %v1531
    %1538 = vst.msk [vmem:[#allocation2 + $0x8] sm:$0xff] %vm1536, %v1533
    %v1539 = vld [vmem:[#allocation2] sm:$0xff]
    %v1540 = vld [vmem:[#allocation2 + $0x8] sm:$0xff]
    %v1541 = vld [vmem:[#allocation8] sm:$0xff]
    %v1542 = vld [vmem:[#allocation8 + $0x8] sm:$0xff]
    %v1543 = vld [vmem:[#allocation8 + $0x10] sm:$0xff]
    %v1544 = vld [vmem:[#allocation8 + $0x18] sm:$0xff]
    %v1545 = vld [vmem:[%s4] sm:$0x1]
    %v1547 = vperm.slane %v1545, 0
    %v1550 = vsel %vm97, %v1539, 0
    %v1553 = vsel %vm97, %v1540, 0
    %1555 = vmatpush.msra.mxu0 0.0
    %1556 = vmatpush.msra.mxu0 0.0
    %1557 = vmatpush.msra.mxu0 0.0
    %1558 = vmatpush.msra.mxu0 0.0
    %1559 = vmatpush.msra.mxu0 0.0
    %1560 = vmatpush.msra.mxu0 0.0
    %1561 = vmatpush.msra.mxu0 0.0
    %1562 = vmatpush.msra.mxu0 0.0
    %1563 = vmatpush.msra.mxu0 0.0
    %1564 = vmatpush.msra.mxu0 0.0
    %1565 = vmatpush.msra.mxu0 0.0
    %1566 = vmatpush.msra.mxu0 0.0
    %1567 = vmatpush.msra.mxu0 %v1544
    %1568 = vmatpush.msra.mxu0 %v1543
    %1569 = vmatpush.msra.mxu0 %v1542
    %1570 = vmatpush.msra.mxu0 %v1541
    %1571 = vmatmul.f32.gmra.mxu0 %v1550
    %v1572 = vpop.f32.mrf.mxu0
    %v1573 = vadd.f32 %v1547, %v1572
    %1574 = vmatmul.f32.gmra.mxu0 %v1553
    %v1575 = vpop.f32.mrf.mxu0
    %v1576 = vadd.f32 %v1547, %v1575
    %1577 = vdwg.mxu0
    %1578 = vst.msk [vmem:[#allocation11] sm:$0xff] %vm97, %v1573
    %1579 = vst.msk [vmem:[#allocation11 + $0x8] sm:$0xff] %vm97, %v1576
    // Predicated region
    $region42: #{tpu_custom_call.1} parent=1 // pred_check
      _
    $region43: #{tpu_custom_call.1} parent=1 // pred_check_branch
      %1581 = sbr.rel (0) target = $region45
    $region44: #{tpu_custom_call.1} parent=1 // pred_region
      %1583 = vsyncadd [#allocation5], 0
      %s1584 = sshll.u32 [#allocation11], 4
      %s1585 = int_to_ptr.vmem [resolvable:$true] %s1584
      %s1586 = sshll.u32 %s6, 4
      %s1587 = int_to_ptr.hbm [resolvable:$true] %s1586
      %1592 = dma.vmem_to_hbm [thread:$0]  %s1585, 256, %s1587, [#allocation5], 128, 128, 8
    $region45: #{tpu_custom_call.1} parent=1 // pred_fallthru
      _
    // Predicated region
    $region46: #{tpu_custom_call.1} parent=1 // pred_check
      _
    $region47: #{tpu_custom_call.1} parent=1 // pred_check_branch
      %1594 = sbr.rel (0) target = $region49
    $region48: #{tpu_custom_call.1} parent=1 // pred_region
      %1596 = dma.done [#allocation5], 256
    $region49: #{tpu_custom_call.1} parent=1 // pred_fallthru
      _
    %1597 = vsyncpa [#allocation4], 1
    %1598 = vsyncpa [#allocation7], 1
    %1599 = vsyncpa [#allocation10], 1
    %1600 = vsyncpa [#allocation5], 1

</llo_original>
